<compile_context>
chip_gen: v5e
topology: v5e:2x2
jax: 0.10.0
libtpu: 0.0.40
codegen_flags: <defaults>
</compile_context>

<pallas_src>
import functools
import math

import numpy as np
import jax
import jax.numpy as jnp
from jax import lax
from jax.experimental import pallas as pl
from jax.experimental.pallas import tpu as pltpu

EPS = 1e-6  # Norm eps (PyTorch reference default)

# packed-parameter row indices (prm array, (16, d_model) f32)
_A1, _B1, _A2, _B2, _BQ, _BK, _BV, _BO, _BF2, _NA, _NB = range(11)
_PRM_ROWS = 16


def _norm(x, alpha, bias):
    # PyTorch Norm: alpha * (x - mean) / (std + eps) + bias, with *unbiased* std.
    d = x.shape[-1]
    mean = jnp.mean(x, axis=-1, keepdims=True)
    xc = x - mean
    var = jnp.sum(xc * xc, axis=-1, keepdims=True) * (1.0 / (d - 1))
    std = jnp.sqrt(var)
    # exact divide here (approx reciprocal kept only for softmax)
    return alpha * xc / (std + EPS) + bias


def encoder_layer_kernel(x_ref, mask_ref, w_ref, prm_ref, wf1_ref, bf1_ref, wf2_ref,
                         o_ref, pool_sc, acc_sc, *,
                         heads, seq, d_model, apply_final_norm):
    j = pl.program_id(1)              # d_ff block index ("arbitrary" reduction axis)
    d_k = d_model // heads
    half = seq // 2

    # ---------- j == 0: attention sublayer + pooling prologue (once per batch row) ----------
    @pl.when(j == 0)
    def _attention_and_pool():
        x = x_ref[0].astype(jnp.float32)                 # (S, D)
        prm = prm_ref[...]                               # (16, D) packed small params
        mask_add = mask_ref[0]                           # (1, S) additive mask (0 / -1e9)

        # sublayer 1: x = x + dropout_1(MHA(norm_1(x), ..., mask))   (dropout = identity)
        x2 = _norm(x, prm[_A1:_A1 + 1], prm[_B1:_B1 + 1])
        x2b = x2.astype(jnp.bfloat16)
        # fused full-width projections; 1/sqrt(d_k) pre-folded into Wq / bq at init
        q = jnp.dot(x2b, w_ref[0], preferred_element_type=jnp.float32) + prm[_BQ:_BQ + 1]
        k = jnp.dot(x2b, w_ref[1], preferred_element_type=jnp.float32) + prm[_BK:_BK + 1]
        v = jnp.dot(x2b, w_ref[2], preferred_element_type=jnp.float32) + prm[_BV:_BV + 1]
        # heads folded into a leading einsum batch dim (one batched dot, not H tiny dots)
        q3 = jnp.stack([q[:, h * d_k:(h + 1) * d_k] for h in range(heads)], 0).astype(jnp.bfloat16)
        k3 = jnp.stack([k[:, h * d_k:(h + 1) * d_k] for h in range(heads)], 0).astype(jnp.bfloat16)
        v3 = jnp.stack([v[:, h * d_k:(h + 1) * d_k] for h in range(heads)], 0).astype(jnp.bfloat16)
        s = jnp.einsum('htd,hsd->hts', q3, k3,
                       preferred_element_type=jnp.float32) + mask_add   # mask broadcast once
        s = s - jnp.max(s, axis=-1, keepdims=True)
        p = jnp.exp(s)
        p = p * pl.reciprocal(jnp.sum(p, axis=-1, keepdims=True), approx=True)
        # TODO(synk): attention-weight dropout / dropout_1 treated as identity (eval mode).
        oh = jnp.einsum('hts,hsd->htd', p.astype(jnp.bfloat16), v3,
                        preferred_element_type=jnp.float32)             # (H, S, d_k)
        o2 = jnp.concatenate([oh[h] for h in range(heads)], axis=1)     # (S, D)
        attn = jnp.dot(o2.astype(jnp.bfloat16), w_ref[3],
                       preferred_element_type=jnp.float32) + prm[_BO:_BO + 1]
        x = x + attn

        # sublayer-2 prologue: pooled residual + pooled FFN input, fused into one tiny dot.
        x2 = _norm(x, prm[_A2:_A2 + 1], prm[_B2:_B2 + 1])
        row = lax.broadcasted_iota(jnp.int32, (half, seq), 0)
        col = lax.broadcasted_iota(jnp.int32, (half, seq), 1)
        pool = jnp.where((col == 2 * row) | (col == 2 * row + 1),
                         jnp.float32(0.5), jnp.float32(0.0))            # (S/2, S) per-batch
        pooled = jnp.dot(pool, jnp.concatenate([x, x2], axis=1),
                         preferred_element_type=jnp.float32)            # (S/2, 2D)
        pool_sc[...] = pooled          # [:, :D] = pool(x) residual, [:, D:] = pool(norm_2(x))
        acc_sc[...] = jnp.zeros_like(acc_sc)

    # ---------- every j: FFN streamed over d_ff blocks (pipelined weight DMA) ----------
    # TODO(synk): FeedForward_enc source is not in the spec; it must map (B,T,D)->(B,T/2,D).
    # Assumed: average adjacent token pairs -> Linear(d_model,d_ff) -> ReLU ->
    # Linear(d_ff,d_model), internal dropout = identity.
    ff_in = pool_sc[:, d_model:2 * d_model].astype(jnp.bfloat16)        # (S/2, D)
    hdn = jnp.dot(ff_in, wf1_ref[...], preferred_element_type=jnp.float32) + bf1_ref[...]
    hdn = jnp.maximum(hdn, 0.0)
    acc_sc[...] += jnp.dot(hdn.astype(jnp.bfloat16), wf2_ref[...],
                           preferred_element_type=jnp.float32)

    # ---------- last j: residual add, optional fused Encoder.norm, store ----------
    @pl.when(j == pl.num_programs(1) - 1)
    def _finalize():
        prm = prm_ref[...]
        out = pool_sc[:, 0:d_model] + acc_sc[...] + prm[_BF2:_BF2 + 1]  # dropout_2 = identity
        if apply_final_norm:                                            # fused Encoder.norm
            out = _norm(out, prm[_NA:_NA + 1], prm[_NB:_NB + 1])
        o_ref[0] = out.astype(o_ref.dtype)


def encoder_layer_call(x, mask_add, layer, *, heads, apply_final_norm, out_dtype):
    B, S, D = x.shape
    d_ff = layer['wf1'].shape[1]
    t_ff = min(d_ff, 512)
    assert d_ff % t_ff == 0
    kff = d_ff // t_ff

    kernel = functools.partial(encoder_layer_kernel, heads=heads, seq=S, d_model=D,
                               apply_final_norm=apply_final_norm)
    grid_spec = pltpu.PrefetchScalarGridSpec(
        num_scalar_prefetch=0,
        grid=(B, kff),                                     # (parallel batch, d_ff stream)
        in_specs=[
            pl.BlockSpec((1, S, D), lambda b, j: (b, 0, 0)),        # x (j-invariant)
            pl.BlockSpec((1, 1, S), lambda b, j: (b, 0, 0)),        # additive mask
            pl.BlockSpec((4, D, D), lambda b, j: (0, 0, 0)),        # stacked Wq/Wk/Wv/Wo (bf16)
            pl.BlockSpec((_PRM_ROWS, D), lambda b, j: (0, 0)),      # packed small params
            pl.BlockSpec((D, t_ff), lambda b, j: (0, j)),           # Wf1 streamed over d_ff
            pl.BlockSpec((1, t_ff), lambda b, j: (0, j)),           # bf1 streamed
            pl.BlockSpec((t_ff, D), lambda b, j: (j, 0)),           # Wf2 streamed
        ],
        out_specs=pl.BlockSpec((1, S // 2, D), lambda b, j: (b, 0, 0)),
        scratch_shapes=[pltpu.VMEM((S // 2, 2 * D), jnp.float32),   # pooled [x | norm_2(x)]
                        pltpu.VMEM((S // 2, D), jnp.float32)],      # FFN accumulator
    )
    return pl.pallas_call(
        kernel,
        out_shape=jax.ShapeDtypeStruct((B, S // 2, D), out_dtype),
        grid_spec=grid_spec,
        compiler_params=pltpu.CompilerParams(
            dimension_semantics=("parallel", "arbitrary"),   # batch across TCs (v7x megacore)
            vmem_limit_bytes=32 * 1024 * 1024,               # headroom above v5e's 16 MiB default
        ),
    )(x, mask_add, layer['w_attn'], layer['prm'],
      layer['wf1'], layer['bf1'], layer['wf2'])


def _positional_encoding(max_seq_len, d_model):
    pe = np.zeros((max_seq_len, d_model), np.float32)
    pos = np.arange(max_seq_len, dtype=np.float32)[:, None]
    div = np.exp(np.arange(0, d_model, 2, dtype=np.float32) *
                 (-math.log(10000.0) / d_model))
    pe[:, 0::2] = np.sin(pos * div)
    pe[:, 1::2] = np.cos(pos * div)
    return jnp.asarray(pe)


def init_encoder_params(key, vocab_size, d_model, N, heads, d_ff, max_seq_len):
    d_k = d_model // heads
    q_scale = 1.0 / math.sqrt(d_k)      # folded into Wq / bq (removes per-score multiply)

    def w(k, shape, scale=0.02):
        return jax.random.normal(k, shape, jnp.float32) * scale

    keys = jax.random.split(key, 1 + N)
    params = {
        'embed': w(keys[0], (vocab_size, d_model), scale=1.0),
        'pe': _positional_encoding(max_seq_len, d_model),
        'layers': [],
    }
    ones = jnp.ones((d_model,), jnp.float32)
    zeros = jnp.zeros((d_model,), jnp.float32)
    norm_a, norm_b = ones, zeros        # final Encoder.norm (alpha=1, bias=0)

    for i in range(N):
        ks = jax.random.split(keys[1 + i], 12)
        wq = w(ks[0], (d_model, d_model)) * q_scale
        bq = w(ks[1], (d_model,)) * q_scale
        wk = w(ks[2], (d_model, d_model)); bk = w(ks[3], (d_model,))
        wv = w(ks[4], (d_model, d_model)); bv = w(ks[5], (d_model,))
        wo = w(ks[6], (d_model, d_model)); bo = w(ks[7], (d_model,))
        wf1 = w(ks[8], (d_model, d_ff));   bf1 = w(ks[9], (1, d_ff))
        wf2 = w(ks[10], (d_ff, d_model));  bf2 = w(ks[11], (d_model,))
        prm = jnp.stack([ones, zeros,            # a1, b1
                         ones, zeros,            # a2, b2
                         bq, bk, bv, bo,
                         bf2, norm_a, norm_b] + [zeros] * (_PRM_ROWS - 11), axis=0)
        params['layers'].append({
            'w_attn': jnp.stack([wq, wk, wv, wo], axis=0).astype(jnp.bfloat16),
            'prm': prm,
            'wf1': wf1.astype(jnp.bfloat16),
            'bf1': bf1,
            'wf2': wf2.astype(jnp.bfloat16),
        })
    return params


def encoder_forward(params, src, mask, N, heads):
    B, T = src.shape
    d_model = params['embed'].shape[1]
    # Embedder + PositionalEncoder (glue, plain JAX; PE dropout = identity)
    x = jnp.take(params['embed'], src, axis=0)                  # (B, T, D)
    x = x * jnp.float32(math.sqrt(d_model)) + params['pe'][:T]

    cur_mask = mask                                             # (B, 1, S) int
    for i in range(N):
        mask_add = jnp.where(cur_mask == 0, jnp.float32(-1e9), jnp.float32(0.0))
        # bf16 inter-layer HBM round trip; final layer (with fused Encoder.norm) emits f32.
        out_dtype = jnp.float32 if i == N - 1 else jnp.bfloat16
        x = encoder_layer_call(x, mask_add, params['layers'][i], heads=heads,
                               apply_final_norm=(i == N - 1), out_dtype=out_dtype)
        # mask halving: new_mask[:, :, i] = mask[:, :, 2i+1] | mask[:, :, 2i]
        half = cur_mask.shape[2] // 2
        cur_mask = cur_mask[:, :, 1:2 * half:2] | cur_mask[:, :, 0:2 * half:2]
    return x, cur_mask


if __name__ == "__main__":
    key = jax.random.PRNGKey(0)
    B, T = 2, 8
    vocab_size, d_model, N, heads, d_ff = 50, 32, 2, 4, 2048
    max_seq_len = 16

    k_src, k_par = jax.random.split(key, 2)
    src = jax.random.randint(k_src, (B, T), 0, vocab_size, dtype=jnp.int32)
    # mask out the last two source positions to exercise masking
    src_mask = jnp.ones((B, 1, T), jnp.int32).at[:, :, T - 2:].set(0)

    params = init_encoder_params(k_par, vocab_size, d_model, N, heads, d_ff, max_seq_len)

    out, out_mask = encoder_forward(params, src, src_mask, N, heads)
    out = jax.block_until_ready(out)
    assert out.shape == (B, T // (2 ** N), d_model) and out.dtype == jnp.float32
    assert out_mask.shape == (B, 1, T // (2 ** N))
    assert bool(jnp.all(jnp.isfinite(out)))
    print("KERNEL_OK")
</pallas_src>

<mosaic_0001>
module attributes {stable_mosaic.version = 11 : i64} {
  func.func @encoder_layer_kernel(%arg0: i32, %arg1: i32, %arg2: memref<1x8x32xf32, #tpu.memory_space<vmem>>, %arg3: memref<1x1x8xf32, #tpu.memory_space<vmem>>, %arg4: memref<4x32x32xbf16, #tpu.memory_space<vmem>>, %arg5: memref<16x32xf32, #tpu.memory_space<vmem>>, %arg6: memref<32x512xbf16, #tpu.memory_space<vmem>>, %arg7: memref<1x512xf32, #tpu.memory_space<vmem>>, %arg8: memref<512x32xbf16, #tpu.memory_space<vmem>>, %arg9: memref<1x4x32xbf16, #tpu.memory_space<vmem>>, %arg10: memref<4x64xf32, #tpu.memory_space<vmem>>, %arg11: memref<4x32xf32, #tpu.memory_space<vmem>>) attributes {dimension_semantics = [#tpu.dimension_semantics<parallel>, #tpu.dimension_semantics<arbitrary>], iteration_bounds = array<i64: 2, 4>, scalar_prefetch = 0 : i64, scratch_operands = 2 : i64, tpu.core_type = #tpu.core_type<tc>, window_params = [{transform_indices = @transform_0, window_bounds = array<i64: 1, 8, 32>}, {transform_indices = @transform_1, window_bounds = array<i64: 1, 1, 8>}, {pipeline_mode = #tpu.pipeline_mode<synchronous>, transform_indices = @transform_2, window_bounds = array<i64: 4, 32, 32>}, {pipeline_mode = #tpu.pipeline_mode<synchronous>, transform_indices = @transform_3, window_bounds = array<i64: 16, 32>}, {transform_indices = @transform_4, window_bounds = array<i64: 32, 512>}, {transform_indices = @transform_5, window_bounds = array<i64: 1, 512>}, {transform_indices = @transform_6, window_bounds = array<i64: 512, 32>}, {transform_indices = @transform_7, window_bounds = array<i64: 1, 4, 32>}]} {
    %c0_i32 = arith.constant 0 : i32
    %0 = arith.cmpi eq, %arg1, %c0_i32 : i32
    %1 = arith.extui %0 : i1 to i32
    %c0_i32_0 = arith.constant 0 : i32
    %2 = arith.cmpi ne, %1, %c0_i32_0 : i32
    scf.if %2 {
      %c0_14 = arith.constant 0 : index
      %c0_15 = arith.constant 0 : index
      %c0_16 = arith.constant 0 : index
      %21 = vector.load %arg2[%c0_14, %c0_15, %c0_16] : memref<1x8x32xf32, #tpu.memory_space<vmem>>, vector<1x8x32xf32>
      %22 = vector.shape_cast %21 : vector<1x8x32xf32> to vector<8x32xf32>
      %c0_17 = arith.constant 0 : index
      %c0_18 = arith.constant 0 : index
      %23 = vector.load %arg5[%c0_17, %c0_18] : memref<16x32xf32, #tpu.memory_space<vmem>>, vector<16x32xf32>
      %c0_19 = arith.constant 0 : index
      %c0_20 = arith.constant 0 : index
      %c0_21 = arith.constant 0 : index
      %24 = vector.load %arg3[%c0_19, %c0_20, %c0_21] : memref<1x1x8xf32, #tpu.memory_space<vmem>>, vector<1x1x8xf32>
      %25 = vector.shape_cast %24 : vector<1x1x8xf32> to vector<1x8xf32>
      %26 = vector.extract_strided_slice %23 {offsets = [0, 0], sizes = [1, 32], strides = [1, 1]} : vector<16x32xf32> to vector<1x32xf32>
      %27 = vector.extract_strided_slice %23 {offsets = [1, 0], sizes = [1, 32], strides = [1, 1]} : vector<16x32xf32> to vector<1x32xf32>
      %cst_22 = arith.constant dense<0.000000e+00> : vector<8xf32>
      %28 = vector.multi_reduction <add>, %22, %cst_22 [1] : vector<8x32xf32> to vector<8xf32>
      %29 = vector.shape_cast %28 : vector<8xf32> to vector<8x1xf32>
      %cst_23 = arith.constant 3.200000e+01 : f32
      %30 = vector.broadcast %cst_23 : f32 to vector<8x1xf32>
      %31 = arith.divf %29, %30 : vector<8x1xf32>
      %32 = vector.broadcast %31 : vector<8x1xf32> to vector<8x32xf32>
      %33 = arith.subf %22, %32 : vector<8x32xf32>
      %34 = arith.mulf %33, %33 : vector<8x32xf32>
      %cst_24 = arith.constant dense<0.000000e+00> : vector<8xf32>
      %35 = vector.multi_reduction <add>, %34, %cst_24 [1] : vector<8x32xf32> to vector<8xf32>
      %36 = vector.shape_cast %35 : vector<8xf32> to vector<8x1xf32>
      %cst_25 = arith.constant 0.0322580636 : f32
      %37 = vector.broadcast %cst_25 : f32 to vector<8x1xf32>
      %38 = arith.mulf %36, %37 : vector<8x1xf32>
      %39 = math.sqrt %38 : vector<8x1xf32>
      %40 = vector.broadcast %26 : vector<1x32xf32> to vector<8x32xf32>
      %41 = arith.mulf %40, %33 : vector<8x32xf32>
      %cst_26 = arith.constant 9.99999997E-7 : f32
      %42 = vector.broadcast %cst_26 : f32 to vector<8x1xf32>
      %43 = arith.addf %39, %42 : vector<8x1xf32>
      %44 = vector.broadcast %43 : vector<8x1xf32> to vector<8x32xf32>
      %45 = arith.divf %41, %44 : vector<8x32xf32>
      %46 = vector.broadcast %27 : vector<1x32xf32> to vector<8x32xf32>
      %47 = arith.addf %45, %46 : vector<8x32xf32>
      %48 = arith.truncf %47 : vector<8x32xf32> to vector<8x32xbf16>
      %c0_27 = arith.constant 0 : index
      %c0_28 = arith.constant 0 : index
      %c0_29 = arith.constant 0 : index
      %49 = vector.load %arg4[%c0_27, %c0_28, %c0_29] : memref<4x32x32xbf16, #tpu.memory_space<vmem>>, vector<1x32x32xbf16>
      %50 = vector.shape_cast %49 : vector<1x32x32xbf16> to vector<32x32xbf16>
      %cst_30 = arith.constant dense<0.000000e+00> : vector<8x32xf32>
      %51 = tpu.matmul %48, %50, %cst_30 {dimension_numbers = #tpu.dot_dimension_numbers<[1], [0], [0], [1], [0, 0, 1, 1], [], []>} : vector<8x32xbf16>, vector<32x32xbf16>, vector<8x32xf32> -> vector<8x32xf32>
      %52 = vector.extract_strided_slice %23 {offsets = [4, 0], sizes = [1, 32], strides = [1, 1]} : vector<16x32xf32> to vector<1x32xf32>
      %53 = vector.broadcast %52 : vector<1x32xf32> to vector<8x32xf32>
      %54 = arith.addf %51, %53 : vector<8x32xf32>
      %c1 = arith.constant 1 : index
      %c0_31 = arith.constant 0 : index
      %c0_32 = arith.constant 0 : index
      %55 = vector.load %arg4[%c1, %c0_31, %c0_32] : memref<4x32x32xbf16, #tpu.memory_space<vmem>>, vector<1x32x32xbf16>
      %56 = vector.shape_cast %55 : vector<1x32x32xbf16> to vector<32x32xbf16>
      %cst_33 = arith.constant dense<0.000000e+00> : vector<8x32xf32>
      %57 = tpu.matmul %48, %56, %cst_33 {dimension_numbers = #tpu.dot_dimension_numbers<[1], [0], [0], [1], [0, 0, 1, 1], [], []>} : vector<8x32xbf16>, vector<32x32xbf16>, vector<8x32xf32> -> vector<8x32xf32>
      %58 = vector.extract_strided_slice %23 {offsets = [5, 0], sizes = [1, 32], strides = [1, 1]} : vector<16x32xf32> to vector<1x32xf32>
      %59 = vector.broadcast %58 : vector<1x32xf32> to vector<8x32xf32>
      %60 = arith.addf %57, %59 : vector<8x32xf32>
      %c2 = arith.constant 2 : index
      %c0_34 = arith.constant 0 : index
      %c0_35 = arith.constant 0 : index
      %61 = vector.load %arg4[%c2, %c0_34, %c0_35] : memref<4x32x32xbf16, #tpu.memory_space<vmem>>, vector<1x32x32xbf16>
      %62 = vector.shape_cast %61 : vector<1x32x32xbf16> to vector<32x32xbf16>
      %cst_36 = arith.constant dense<0.000000e+00> : vector<8x32xf32>
      %63 = tpu.matmul %48, %62, %cst_36 {dimension_numbers = #tpu.dot_dimension_numbers<[1], [0], [0], [1], [0, 0, 1, 1], [], []>} : vector<8x32xbf16>, vector<32x32xbf16>, vector<8x32xf32> -> vector<8x32xf32>
      %64 = vector.extract_strided_slice %23 {offsets = [6, 0], sizes = [1, 32], strides = [1, 1]} : vector<16x32xf32> to vector<1x32xf32>
      %65 = vector.broadcast %64 : vector<1x32xf32> to vector<8x32xf32>
      %66 = arith.addf %63, %65 : vector<8x32xf32>
      %67 = vector.extract_strided_slice %54 {offsets = [0, 0], sizes = [8, 8], strides = [1, 1]} : vector<8x32xf32> to vector<8x8xf32>
      %68 = vector.extract_strided_slice %54 {offsets = [0, 8], sizes = [8, 8], strides = [1, 1]} : vector<8x32xf32> to vector<8x8xf32>
      %69 = vector.extract_strided_slice %54 {offsets = [0, 16], sizes = [8, 8], strides = [1, 1]} : vector<8x32xf32> to vector<8x8xf32>
      %70 = vector.extract_strided_slice %54 {offsets = [0, 24], sizes = [8, 8], strides = [1, 1]} : vector<8x32xf32> to vector<8x8xf32>
      %71 = vector.shape_cast %67 : vector<8x8xf32> to vector<1x8x8xf32>
      %72 = vector.shape_cast %68 : vector<8x8xf32> to vector<1x8x8xf32>
      %73 = vector.shape_cast %69 : vector<8x8xf32> to vector<1x8x8xf32>
      %74 = vector.shape_cast %70 : vector<8x8xf32> to vector<1x8x8xf32>
      %75 = tpu.concatenate %71, %72, %73, %74 in 0 : vector<1x8x8xf32>, vector<1x8x8xf32>, vector<1x8x8xf32>, vector<1x8x8xf32> -> vector<4x8x8xf32>
      %76 = arith.truncf %75 : vector<4x8x8xf32> to vector<4x8x8xbf16>
      %77 = vector.extract_strided_slice %60 {offsets = [0, 0], sizes = [8, 8], strides = [1, 1]} : vector<8x32xf32> to vector<8x8xf32>
      %78 = vector.extract_strided_slice %60 {offsets = [0, 8], sizes = [8, 8], strides = [1, 1]} : vector<8x32xf32> to vector<8x8xf32>
      %79 = vector.extract_strided_slice %60 {offsets = [0, 16], sizes = [8, 8], strides = [1, 1]} : vector<8x32xf32> to vector<8x8xf32>
      %80 = vector.extract_strided_slice %60 {offsets = [0, 24], sizes = [8, 8], strides = [1, 1]} : vector<8x32xf32> to vector<8x8xf32>
      %81 = vector.shape_cast %77 : vector<8x8xf32> to vector<1x8x8xf32>
      %82 = vector.shape_cast %78 : vector<8x8xf32> to vector<1x8x8xf32>
      %83 = vector.shape_cast %79 : vector<8x8xf32> to vector<1x8x8xf32>
      %84 = vector.shape_cast %80 : vector<8x8xf32> to vector<1x8x8xf32>
      %85 = tpu.concatenate %81, %82, %83, %84 in 0 : vector<1x8x8xf32>, vector<1x8x8xf32>, vector<1x8x8xf32>, vector<1x8x8xf32> -> vector<4x8x8xf32>
      %86 = arith.truncf %85 : vector<4x8x8xf32> to vector<4x8x8xbf16>
      %87 = vector.extract_strided_slice %66 {offsets = [0, 0], sizes = [8, 8], strides = [1, 1]} : vector<8x32xf32> to vector<8x8xf32>
      %88 = vector.extract_strided_slice %66 {offsets = [0, 8], sizes = [8, 8], strides = [1, 1]} : vector<8x32xf32> to vector<8x8xf32>
      %89 = vector.extract_strided_slice %66 {offsets = [0, 16], sizes = [8, 8], strides = [1, 1]} : vector<8x32xf32> to vector<8x8xf32>
      %90 = vector.extract_strided_slice %66 {offsets = [0, 24], sizes = [8, 8], strides = [1, 1]} : vector<8x32xf32> to vector<8x8xf32>
      %91 = vector.shape_cast %87 : vector<8x8xf32> to vector<1x8x8xf32>
      %92 = vector.shape_cast %88 : vector<8x8xf32> to vector<1x8x8xf32>
      %93 = vector.shape_cast %89 : vector<8x8xf32> to vector<1x8x8xf32>
      %94 = vector.shape_cast %90 : vector<8x8xf32> to vector<1x8x8xf32>
      %95 = tpu.concatenate %91, %92, %93, %94 in 0 : vector<1x8x8xf32>, vector<1x8x8xf32>, vector<1x8x8xf32>, vector<1x8x8xf32> -> vector<4x8x8xf32>
      %96 = arith.truncf %95 : vector<4x8x8xf32> to vector<4x8x8xbf16>
      "tpu.trace_start"() <{level = 10 : i32, message = "htd,hsd->hts"}> : () -> ()
      %cst_37 = arith.constant dense<0.000000e+00> : vector<4x8x8xf32>
      %97 = tpu.matmul %76, %86, %cst_37 {dimension_numbers = #tpu.dot_dimension_numbers<[2], [2], [1], [1], [0, 0, 0, 1, 1, 1], [0], [0]>} : vector<4x8x8xbf16>, vector<4x8x8xbf16>, vector<4x8x8xf32> -> vector<4x8x8xf32>
      "tpu.trace_stop"() : () -> ()
      %98 = vector.shape_cast %25 : vector<1x8xf32> to vector<1x1x8xf32>
      %99 = vector.broadcast %98 : vector<1x1x8xf32> to vector<4x8x8xf32>
      %100 = arith.addf %97, %99 : vector<4x8x8xf32>
      %cst_38 = arith.constant dense<0xFF800000> : vector<4x8xf32>
      %101 = vector.multi_reduction <maximumf>, %100, %cst_38 [2] : vector<4x8x8xf32> to vector<4x8xf32>
      %102 = vector.shape_cast %101 : vector<4x8xf32> to vector<4x8x1xf32>
      %103 = vector.broadcast %102 : vector<4x8x1xf32> to vector<4x8x8xf32>
      %104 = arith.subf %100, %103 : vector<4x8x8xf32>
      %105 = math.exp %104 : vector<4x8x8xf32>
      %cst_39 = arith.constant dense<0.000000e+00> : vector<4x8xf32>
      %106 = vector.multi_reduction <add>, %105, %cst_39 [2] : vector<4x8x8xf32> to vector<4x8xf32>
      %107 = vector.shape_cast %106 : vector<4x8xf32> to vector<4x8x1xf32>
      %108 = tpu.reciprocal %107 {approx = true} : vector<4x8x1xf32> -> vector<4x8x1xf32>
      %109 = vector.broadcast %108 : vector<4x8x1xf32> to vector<4x8x8xf32>
      %110 = arith.mulf %105, %109 : vector<4x8x8xf32>
      %111 = arith.truncf %110 : vector<4x8x8xf32> to vector<4x8x8xbf16>
      "tpu.trace_start"() <{level = 10 : i32, message = "hts,hsd->htd"}> : () -> ()
      %cst_40 = arith.constant dense<0.000000e+00> : vector<4x8x8xf32>
      %112 = tpu.matmul %111, %96, %cst_40 {dimension_numbers = #tpu.dot_dimension_numbers<[2], [1], [1], [2], [0, 0, 0, 1, 1, 2], [0], [0]>} : vector<4x8x8xbf16>, vector<4x8x8xbf16>, vector<4x8x8xf32> -> vector<4x8x8xf32>
      "tpu.trace_stop"() : () -> ()
      %113 = vector.extract_strided_slice %112 {offsets = [0, 0, 0], sizes = [1, 8, 8], strides = [1, 1, 1]} : vector<4x8x8xf32> to vector<1x8x8xf32>
      %114 = vector.shape_cast %113 : vector<1x8x8xf32> to vector<8x8xf32>
      %115 = vector.extract_strided_slice %112 {offsets = [1, 0, 0], sizes = [1, 8, 8], strides = [1, 1, 1]} : vector<4x8x8xf32> to vector<1x8x8xf32>
      %116 = vector.shape_cast %115 : vector<1x8x8xf32> to vector<8x8xf32>
      %117 = vector.extract_strided_slice %112 {offsets = [2, 0, 0], sizes = [1, 8, 8], strides = [1, 1, 1]} : vector<4x8x8xf32> to vector<1x8x8xf32>
      %118 = vector.shape_cast %117 : vector<1x8x8xf32> to vector<8x8xf32>
      %119 = vector.extract_strided_slice %112 {offsets = [3, 0, 0], sizes = [1, 8, 8], strides = [1, 1, 1]} : vector<4x8x8xf32> to vector<1x8x8xf32>
      %120 = vector.shape_cast %119 : vector<1x8x8xf32> to vector<8x8xf32>
      %121 = tpu.concatenate %114, %116, %118, %120 in 1 : vector<8x8xf32>, vector<8x8xf32>, vector<8x8xf32>, vector<8x8xf32> -> vector<8x32xf32>
      %122 = arith.truncf %121 : vector<8x32xf32> to vector<8x32xbf16>
      %c3 = arith.constant 3 : index
      %c0_41 = arith.constant 0 : index
      %c0_42 = arith.constant 0 : index
      %123 = vector.load %arg4[%c3, %c0_41, %c0_42] : memref<4x32x32xbf16, #tpu.memory_space<vmem>>, vector<1x32x32xbf16>
      %124 = vector.shape_cast %123 : vector<1x32x32xbf16> to vector<32x32xbf16>
      %cst_43 = arith.constant dense<0.000000e+00> : vector<8x32xf32>
      %125 = tpu.matmul %122, %124, %cst_43 {dimension_numbers = #tpu.dot_dimension_numbers<[1], [0], [0], [1], [0, 0, 1, 1], [], []>} : vector<8x32xbf16>, vector<32x32xbf16>, vector<8x32xf32> -> vector<8x32xf32>
      %126 = vector.extract_strided_slice %23 {offsets = [7, 0], sizes = [1, 32], strides = [1, 1]} : vector<16x32xf32> to vector<1x32xf32>
      %127 = vector.broadcast %126 : vector<1x32xf32> to vector<8x32xf32>
      %128 = arith.addf %125, %127 : vector<8x32xf32>
      %129 = arith.addf %22, %128 : vector<8x32xf32>
      %130 = vector.extract_strided_slice %23 {offsets = [2, 0], sizes = [1, 32], strides = [1, 1]} : vector<16x32xf32> to vector<1x32xf32>
      %131 = vector.extract_strided_slice %23 {offsets = [3, 0], sizes = [1, 32], strides = [1, 1]} : vector<16x32xf32> to vector<1x32xf32>
      %cst_44 = arith.constant dense<0.000000e+00> : vector<8xf32>
      %132 = vector.multi_reduction <add>, %129, %cst_44 [1] : vector<8x32xf32> to vector<8xf32>
      %133 = vector.shape_cast %132 : vector<8xf32> to vector<8x1xf32>
      %cst_45 = arith.constant 3.200000e+01 : f32
      %134 = vector.broadcast %cst_45 : f32 to vector<8x1xf32>
      %135 = arith.divf %133, %134 : vector<8x1xf32>
      %136 = vector.broadcast %135 : vector<8x1xf32> to vector<8x32xf32>
      %137 = arith.subf %129, %136 : vector<8x32xf32>
      %138 = arith.mulf %137, %137 : vector<8x32xf32>
      %cst_46 = arith.constant dense<0.000000e+00> : vector<8xf32>
      %139 = vector.multi_reduction <add>, %138, %cst_46 [1] : vector<8x32xf32> to vector<8xf32>
      %140 = vector.shape_cast %139 : vector<8xf32> to vector<8x1xf32>
      %cst_47 = arith.constant 0.0322580636 : f32
      %141 = vector.broadcast %cst_47 : f32 to vector<8x1xf32>
      %142 = arith.mulf %140, %141 : vector<8x1xf32>
      %143 = math.sqrt %142 : vector<8x1xf32>
      %144 = vector.broadcast %130 : vector<1x32xf32> to vector<8x32xf32>
      %145 = arith.mulf %144, %137 : vector<8x32xf32>
      %cst_48 = arith.constant 9.99999997E-7 : f32
      %146 = vector.broadcast %cst_48 : f32 to vector<8x1xf32>
      %147 = arith.addf %143, %146 : vector<8x1xf32>
      %148 = vector.broadcast %147 : vector<8x1xf32> to vector<8x32xf32>
      %149 = arith.divf %145, %148 : vector<8x32xf32>
      %150 = vector.broadcast %131 : vector<1x32xf32> to vector<8x32xf32>
      %151 = arith.addf %149, %150 : vector<8x32xf32>
      %152 = tpu.iota {dimensions = array<i32: 0>} : vector<4x8xi32>
      %153 = tpu.iota {dimensions = array<i32: 1>} : vector<4x8xi32>
      %c2_i32 = arith.constant 2 : i32
      %154 = vector.broadcast %c2_i32 : i32 to vector<4x8xi32>
      %155 = arith.muli %154, %152 : vector<4x8xi32>
      %156 = arith.cmpi eq, %153, %155 : vector<4x8xi32>
      %c2_i32_49 = arith.constant 2 : i32
      %157 = vector.broadcast %c2_i32_49 : i32 to vector<4x8xi32>
      %158 = arith.muli %157, %152 : vector<4x8xi32>
      %c1_i32 = arith.constant 1 : i32
      %159 = vector.broadcast %c1_i32 : i32 to vector<4x8xi32>
      %160 = arith.addi %158, %159 : vector<4x8xi32>
      %161 = arith.cmpi eq, %153, %160 : vector<4x8xi32>
      %162 = arith.ori %156, %161 : vector<4x8xi1>
      %cst_50 = arith.constant 5.000000e-01 : f32
      %cst_51 = arith.constant 0.000000e+00 : f32
      %163 = vector.broadcast %cst_50 : f32 to vector<4x8xf32>
      %164 = vector.broadcast %cst_51 : f32 to vector<4x8xf32>
      %165 = arith.select %162, %163, %164 : vector<4x8xi1>, vector<4x8xf32>
      %166 = tpu.concatenate %129, %151 in 1 : vector<8x32xf32>, vector<8x32xf32> -> vector<8x64xf32>
      %cst_52 = arith.constant dense<0.000000e+00> : vector<4x64xf32>
      %167 = tpu.matmul %165, %166, %cst_52 {dimension_numbers = #tpu.dot_dimension_numbers<[1], [0], [0], [1], [0, 0, 1, 1], [], []>} : vector<4x8xf32>, vector<8x64xf32>, vector<4x64xf32> -> vector<4x64xf32>
      %c0_53 = arith.constant 0 : index
      %c0_54 = arith.constant 0 : index
      %168 = vector.load %arg10[%c0_53, %c0_54] : memref<4x64xf32, #tpu.memory_space<vmem>>, vector<4x64xf32>
      tpu.vector_store %arg10[%c0_53, %c0_54], %167 {strides = array<i32>} : memref<4x64xf32, #tpu.memory_space<vmem>>, vector<4x64xf32>,
      %cst_55 = arith.constant 0.000000e+00 : f32
      %169 = vector.broadcast %cst_55 : f32 to vector<4x32xf32>
      %c0_56 = arith.constant 0 : index
      %c0_57 = arith.constant 0 : index
      %170 = vector.load %arg11[%c0_56, %c0_57] : memref<4x32xf32, #tpu.memory_space<vmem>>, vector<4x32xf32>
      tpu.vector_store %arg11[%c0_56, %c0_57], %169 {strides = array<i32>} : memref<4x32xf32, #tpu.memory_space<vmem>>, vector<4x32xf32>,
    } else {
    }
    %c0 = arith.constant 0 : index
    %c32 = arith.constant 32 : index
    %3 = vector.load %arg10[%c0, %c32] : memref<4x64xf32, #tpu.memory_space<vmem>>, vector<4x32xf32>
    %4 = arith.truncf %3 : vector<4x32xf32> to vector<4x32xbf16>
    %c0_1 = arith.constant 0 : index
    %c0_2 = arith.constant 0 : index
    %5 = vector.load %arg6[%c0_1, %c0_2] : memref<32x512xbf16, #tpu.memory_space<vmem>>, vector<32x512xbf16>
    %cst = arith.constant dense<0.000000e+00> : vector<4x512xf32>
    %6 = tpu.matmul %4, %5, %cst {dimension_numbers = #tpu.dot_dimension_numbers<[1], [0], [0], [1], [0, 0, 1, 1], [], []>} : vector<4x32xbf16>, vector<32x512xbf16>, vector<4x512xf32> -> vector<4x512xf32>
    %c0_3 = arith.constant 0 : index
    %c0_4 = arith.constant 0 : index
    %7 = vector.load %arg7[%c0_3, %c0_4] : memref<1x512xf32, #tpu.memory_space<vmem>>, vector<1x512xf32>
    %8 = vector.broadcast %7 : vector<1x512xf32> to vector<4x512xf32>
    %9 = arith.addf %6, %8 : vector<4x512xf32>
    %cst_5 = arith.constant 0.000000e+00 : f32
    %10 = vector.broadcast %cst_5 : f32 to vector<4x512xf32>
    %11 = arith.maximumf %9, %10 : vector<4x512xf32>
    %c0_6 = arith.constant 0 : index
    %c0_7 = arith.constant 0 : index
    %12 = vector.load %arg11[%c0_6, %c0_7] : memref<4x32xf32, #tpu.memory_space<vmem>>, vector<4x32xf32>
    %13 = arith.truncf %11 : vector<4x512xf32> to vector<4x512xbf16>
    %c0_8 = arith.constant 0 : index
    %c0_9 = arith.constant 0 : index
    %14 = vector.load %arg8[%c0_8, %c0_9] : memref<512x32xbf16, #tpu.memory_space<vmem>>, vector<512x32xbf16>
    %cst_10 = arith.constant dense<0.000000e+00> : vector<4x32xf32>
    %15 = tpu.matmul %13, %14, %cst_10 {dimension_numbers = #tpu.dot_dimension_numbers<[1], [0], [0], [1], [0, 0, 1, 1], [], []>} : vector<4x512xbf16>, vector<512x32xbf16>, vector<4x32xf32> -> vector<4x32xf32>
    %16 = arith.addf %12, %15 : vector<4x32xf32>
    %c0_11 = arith.constant 0 : index
    %c0_12 = arith.constant 0 : index
    %17 = vector.load %arg11[%c0_11, %c0_12] : memref<4x32xf32, #tpu.memory_space<vmem>>, vector<4x32xf32>
    tpu.vector_store %arg11[%c0_11, %c0_12], %16 {strides = array<i32>} : memref<4x32xf32, #tpu.memory_space<vmem>>, vector<4x32xf32>,
    %c3_i32 = arith.constant 3 : i32
    %18 = arith.cmpi eq, %arg1, %c3_i32 : i32
    %19 = arith.extui %18 : i1 to i32
    %c0_i32_13 = arith.constant 0 : i32
    %20 = arith.cmpi ne, %19, %c0_i32_13 : i32
    scf.if %20 {
      %c0_14 = arith.constant 0 : index
      %c0_15 = arith.constant 0 : index
      %21 = vector.load %arg5[%c0_14, %c0_15] : memref<16x32xf32, #tpu.memory_space<vmem>>, vector<16x32xf32>
      %c0_16 = arith.constant 0 : index
      %c0_17 = arith.constant 0 : index
      %22 = vector.load %arg10[%c0_16, %c0_17] : memref<4x64xf32, #tpu.memory_space<vmem>>, vector<4x32xf32>
      %c0_18 = arith.constant 0 : index
      %c0_19 = arith.constant 0 : index
      %23 = vector.load %arg11[%c0_18, %c0_19] : memref<4x32xf32, #tpu.memory_space<vmem>>, vector<4x32xf32>
      %24 = arith.addf %22, %23 : vector<4x32xf32>
      %25 = vector.extract_strided_slice %21 {offsets = [8, 0], sizes = [1, 32], strides = [1, 1]} : vector<16x32xf32> to vector<1x32xf32>
      %26 = vector.broadcast %25 : vector<1x32xf32> to vector<4x32xf32>
      %27 = arith.addf %24, %26 : vector<4x32xf32>
      %28 = arith.truncf %27 : vector<4x32xf32> to vector<4x32xbf16>
      %c0_20 = arith.constant 0 : index
      %c0_21 = arith.constant 0 : index
      %c0_22 = arith.constant 0 : index
      %29 = vector.load %arg9[%c0_20, %c0_21, %c0_22] : memref<1x4x32xbf16, #tpu.memory_space<vmem>>, vector<1x4x32xbf16>
      %30 = vector.shape_cast %29 : vector<1x4x32xbf16> to vector<4x32xbf16>
      %31 = vector.shape_cast %28 : vector<4x32xbf16> to vector<1x4x32xbf16>
      tpu.vector_store %arg9[%c0_20, %c0_21, %c0_22], %31 {strides = array<i32>} : memref<1x4x32xbf16, #tpu.memory_space<vmem>>, vector<1x4x32xbf16>,
    } else {
    }
    return
  }
  func.func @transform_0(%arg0: i32, %arg1: i32) -> (i32, i32, i32) {
    %c0_i32 = arith.constant 0 : i32
    %c0_i32_0 = arith.constant 0 : i32
    %c0_i32_1 = arith.constant 0 : i32
    return %arg0, %c0_i32, %c0_i32_0 : i32, i32, i32
  }
  func.func @transform_1(%arg0: i32, %arg1: i32) -> (i32, i32, i32) {
    %c0_i32 = arith.constant 0 : i32
    %c0_i32_0 = arith.constant 0 : i32
    %c0_i32_1 = arith.constant 0 : i32
    return %arg0, %c0_i32, %c0_i32_0 : i32, i32, i32
  }
  func.func @transform_2(%arg0: i32, %arg1: i32) -> (i32, i32, i32) {
    %c0_i32 = arith.constant 0 : i32
    %c0_i32_0 = arith.constant 0 : i32
    %c0_i32_1 = arith.constant 0 : i32
    %c0_i32_2 = arith.constant 0 : i32
    return %c0_i32, %c0_i32_0, %c0_i32_1 : i32, i32, i32
  }
  func.func @transform_3(%arg0: i32, %arg1: i32) -> (i32, i32) {
    %c0_i32 = arith.constant 0 : i32
    %c0_i32_0 = arith.constant 0 : i32
    %c0_i32_1 = arith.constant 0 : i32
    return %c0_i32, %c0_i32_0 : i32, i32
  }
  func.func @transform_4(%arg0: i32, %arg1: i32) -> (i32, i32) {
    %c0_i32 = arith.constant 0 : i32
    %c0_i32_0 = arith.constant 0 : i32
    return %c0_i32, %arg1 : i32, i32
  }
  func.func @transform_5(%arg0: i32, %arg1: i32) -> (i32, i32) {
    %c0_i32 = arith.constant 0 : i32
    %c0_i32_0 = arith.constant 0 : i32
    return %c0_i32, %arg1 : i32, i32
  }
  func.func @transform_6(%arg0: i32, %arg1: i32) -> (i32, i32) {
    %c0_i32 = arith.constant 0 : i32
    %c0_i32_0 = arith.constant 0 : i32
    return %arg1, %c0_i32 : i32, i32
  }
  func.func @transform_7(%arg0: i32, %arg1: i32) -> (i32, i32, i32) {
    %c0_i32 = arith.constant 0 : i32
    %c0_i32_0 = arith.constant 0 : i32
    %c0_i32_1 = arith.constant 0 : i32
    return %arg0, %c0_i32, %c0_i32_0 : i32, i32, i32
  }
}

</mosaic_0001>

<llo_original>
// kernel: tpu_custom_call.1
$region0: #{tpu_custom_call.1}
  #allocation0 [shape = 'u32[]', space=smem, size = 0x4, offset = 0x4, fixed_abs, tag = 'smem constant byte address 0x4 - core index']
  #allocation1 [shape = 'u32[72,128]{1,0:T(1,128)}', space=vmem, size = 0x9000, scoped, tag = 'internal scratch']
  #allocation2 [shape = 'f32[4,64]{1,0:T(4,128)}', space=vmem, size = 0x800, scoped, tag = 'scratch operand']
  #allocation3 [shape = 'f32[4,32]{1,0:T(4,128)}', space=vmem, size = 0x800, scoped, tag = 'scratch operand']
  %s0 = inlined_call_operand.vmem [shape: f32[2,8,32], index: 0, kind: input, shape index: {}]
  %s1 = inlined_call_operand.vmem [shape: f32[2,1,8], index: 1, kind: input, shape index: {}]
  %s2 = inlined_call_operand.vmem [shape: bf16[4,32,32], index: 2, kind: input, shape index: {}]
  %s3 = inlined_call_operand.vmem [shape: f32[16,32], index: 3, kind: input, shape index: {}]
  %s4 = inlined_call_operand.vmem [shape: bf16[32,2048], index: 4, kind: input, shape index: {}]
  %s5 = inlined_call_operand.vmem [shape: f32[1,2048], index: 5, kind: input, shape index: {}]
  %s6 = inlined_call_operand.vmem [shape: bf16[2048,32], index: 6, kind: input, shape index: {}]
  %s7 = inlined_call_operand.hbm [shape: bf16[2,4,32], index: 7, kind: output, shape index: {}]
  %s8 = sld [smem:[#allocation0]]
  $region92: #{tpu_custom_call.1} parent=0
    _
  %s10 = ssub.s32 1, %s8
  %s11 = scalar_select 0, %s10, %s8
  $region1: #{tpu_custom_call.1} parent=0
    #allocation4 [shape = 'u8[65536]{0}', space=vmem, size = 0x10000, scoped, tag = 'input window, operand 4']
    #allocation5 [shape = 'u8[2048]{0}', space=vmem, size = 0x800, scoped, tag = 'output window, operand 0']
    #allocation6 [shape = 's32[2]{0}', space=sflag, size = 0x8, scoped, tag = 'scoped memory for tpu_custom_call.1']
    %12 = vsyncpa [#allocation6], 0
    %s13 = scalar_lea.sflag [#allocation6], 1
    %14 = vsyncpa %s13, 0
    loop: start=0, step=1, limit=10
    $region2: #{tpu_custom_call.1} parent=1 // loop_pre_header
      _
    $region3: #{tpu_custom_call.1} parent=1 // loop_header
      %s16 = sphi 0, %s20
      %p17 = scmp.ge.s32.totalorder %s16, 10
      %s23 = sphi 0, %s35
      %s24 = sphi 0, %s31
      %s25 = sphi 0, %s23
      %s26 = sphi 0, %s24
      %s27 = sphi 0, %s25
      %s28 = sphi 0, %s26
      %s38 = sphi 0, %s40
      %s41 = sphi 0, %s38
      %s42 = sphi 0, %s41
      %s58 = sphi 0, %s42
      %s64 = sphi 0, %s66
      %s67 = sphi 0, %s64
      %s68 = sphi 0, %s67
      %s84 = sphi 0, %s68
      %s88 = sphi 0, %s88
      %s90 = sphi 0, %s88
      %s91 = sphi 0, %s90
      %s105 = sphi 0, %s91
      %s109 = sphi 0, %s109
      %s111 = sphi 0, %s109
      %s112 = sphi 0, %s111
      %s126 = sphi 0, %s112
      %s132 = sphi 0, %s134
      %s135 = sphi 0, %s132
      %s136 = sphi 0, %s135
      %s152 = sphi 0, %s136
      %s158 = sphi 0, %s160
      %s161 = sphi 0, %s158
      %s162 = sphi 0, %s161
      %s178 = sphi 0, %s162
      %s184 = sphi 0, %s186
      %s187 = sphi 0, %s184
      %s188 = sphi 0, %s187
      %s204 = sphi 0, %s188
      %s210 = sphi 0, %s212
      %s213 = sphi 0, %s210
      %s214 = sphi 0, %s213
      %s230 = sphi 0, %s214
    $region4: #{tpu_custom_call.1} parent=1 // loop_header_branch
      %19 = sbr.rel (%p17) target = $region8
    $region5: #{tpu_custom_call.1} parent=1 // loop_body
      %s21 = ssub.s32 %s16, 1
      %s22 = ssub.s32 %s16, 2
      %s29 = sadd.s32 1, %s24
      %p30 = scmp.ge.s32.totalorder %s29, 4
      %s31 = scalar_select %p30, 0, %s29
      %s32 = sadd.s32 1, %s23
      %s33 = scalar_select %p30, %s32, %s23
      %p34 = scmp.ge.s32.totalorder %s33, 2
      %s35 = scalar_select %p34, 0, %s33
      %s36 = ssub.s32 %s23, %s35
      %p37 = scmp.eq.s32.totalorder %s36, 0
      %s39 = sadd.s32 %s38, 1
      %s40 = scalar_select %p37, %s38, %s39
      %p43 = pneg %p37
      %p44 = scmp.eq.s32.totalorder %s16, 7
      %p45 = por %p43, %p44
      %p46 = scmp.ne.s32.totalorder %s38, %s41
      %p47 = scmp.eq.s32.totalorder %s16, 0
      %p48 = por %p46, %p47
      %p49 = scmp.ne.s32.totalorder %s38, %s41
      %p50 = scmp.eq.s32.totalorder %s21, 7
      %p51 = por %p49, %p50
      %p52 = scmp.ne.s32.totalorder %s41, %s42
      %p53 = scmp.eq.s32.totalorder %s21, 0
      %p54 = por %p52, %p53
      %p55 = scmp.ne.s32.totalorder %s41, %s42
      %p56 = scmp.eq.s32.totalorder %s22, 7
      %p57 = por %p55, %p56
      %p59 = scmp.ne.s32.totalorder %s42, %s58
      %p60 = scmp.eq.s32.totalorder %s22, 0
      %p61 = por %p59, %p60
      %s62 = ssub.s32 %s23, %s35
      %p63 = scmp.eq.s32.totalorder %s62, 0
      %s65 = sadd.s32 %s64, 1
      %s66 = scalar_select %p63, %s64, %s65
      %p69 = pneg %p63
      %p70 = scmp.eq.s32.totalorder %s16, 7
      %p71 = por %p69, %p70
      %p72 = scmp.ne.s32.totalorder %s64, %s67
      %p73 = scmp.eq.s32.totalorder %s16, 0
      %p74 = por %p72, %p73
      %p75 = scmp.ne.s32.totalorder %s64, %s67
      %p76 = scmp.eq.s32.totalorder %s21, 7
      %p77 = por %p75, %p76
      %p78 = scmp.ne.s32.totalorder %s67, %s68
      %p79 = scmp.eq.s32.totalorder %s21, 0
      %p80 = por %p78, %p79
      %p81 = scmp.ne.s32.totalorder %s67, %s68
      %p82 = scmp.eq.s32.totalorder %s22, 7
      %p83 = por %p81, %p82
      %p85 = scmp.ne.s32.totalorder %s68, %s84
      %p86 = scmp.eq.s32.totalorder %s22, 0
      %p87 = por %p85, %p86
      %s89 = sadd.s32 %s88, 1
      %p92 = scmp.eq.s32.totalorder %s16, 7
      %p93 = scmp.ne.s32.totalorder %s88, %s90
      %p94 = scmp.eq.s32.totalorder %s16, 0
      %p95 = por %p93, %p94
      %p96 = scmp.ne.s32.totalorder %s88, %s90
      %p97 = scmp.eq.s32.totalorder %s21, 7
      %p98 = por %p96, %p97
      %p99 = scmp.ne.s32.totalorder %s90, %s91
      %p100 = scmp.eq.s32.totalorder %s21, 0
      %p101 = por %p99, %p100
      %p102 = scmp.ne.s32.totalorder %s90, %s91
      %p103 = scmp.eq.s32.totalorder %s22, 7
      %p104 = por %p102, %p103
      %p106 = scmp.ne.s32.totalorder %s91, %s105
      %p107 = scmp.eq.s32.totalorder %s22, 0
      %p108 = por %p106, %p107
      %s110 = sadd.s32 %s109, 1
      %p113 = scmp.eq.s32.totalorder %s16, 7
      %p114 = scmp.ne.s32.totalorder %s109, %s111
      %p115 = scmp.eq.s32.totalorder %s16, 0
      %p116 = por %p114, %p115
      %p117 = scmp.ne.s32.totalorder %s109, %s111
      %p118 = scmp.eq.s32.totalorder %s21, 7
      %p119 = por %p117, %p118
      %p120 = scmp.ne.s32.totalorder %s111, %s112
      %p121 = scmp.eq.s32.totalorder %s21, 0
      %p122 = por %p120, %p121
      %p123 = scmp.ne.s32.totalorder %s111, %s112
      %p124 = scmp.eq.s32.totalorder %s22, 7
      %p125 = por %p123, %p124
      %p127 = scmp.ne.s32.totalorder %s112, %s126
      %p128 = scmp.eq.s32.totalorder %s22, 0
      %p129 = por %p127, %p128
      %s130 = ssub.s32 %s24, %s31
      %p131 = scmp.eq.s32.totalorder %s130, 0
      %s133 = sadd.s32 %s132, 1
      %s134 = scalar_select %p131, %s132, %s133
      %p137 = pneg %p131
      %p138 = scmp.eq.s32.totalorder %s16, 7
      %p139 = por %p137, %p138
      %p140 = scmp.ne.s32.totalorder %s132, %s135
      %p141 = scmp.eq.s32.totalorder %s16, 0
      %p142 = por %p140, %p141
      %p143 = scmp.ne.s32.totalorder %s132, %s135
      %p144 = scmp.eq.s32.totalorder %s21, 7
      %p145 = por %p143, %p144
      %p146 = scmp.ne.s32.totalorder %s135, %s136
      %p147 = scmp.eq.s32.totalorder %s21, 0
      %p148 = por %p146, %p147
      %p149 = scmp.ne.s32.totalorder %s135, %s136
      %p150 = scmp.eq.s32.totalorder %s22, 7
      %p151 = por %p149, %p150
      %p153 = scmp.ne.s32.totalorder %s136, %s152
      %p154 = scmp.eq.s32.totalorder %s22, 0
      %p155 = por %p153, %p154
      %s156 = ssub.s32 %s24, %s31
      %p157 = scmp.eq.s32.totalorder %s156, 0
      %s159 = sadd.s32 %s158, 1
      %s160 = scalar_select %p157, %s158, %s159
      %p163 = pneg %p157
      %p164 = scmp.eq.s32.totalorder %s16, 7
      %p165 = por %p163, %p164
      %p166 = scmp.ne.s32.totalorder %s158, %s161
      %p167 = scmp.eq.s32.totalorder %s16, 0
      %p168 = por %p166, %p167
      %p169 = scmp.ne.s32.totalorder %s158, %s161
      %p170 = scmp.eq.s32.totalorder %s21, 7
      %p171 = por %p169, %p170
      %p172 = scmp.ne.s32.totalorder %s161, %s162
      %p173 = scmp.eq.s32.totalorder %s21, 0
      %p174 = por %p172, %p173
      %p175 = scmp.ne.s32.totalorder %s161, %s162
      %p176 = scmp.eq.s32.totalorder %s22, 7
      %p177 = por %p175, %p176
      %p179 = scmp.ne.s32.totalorder %s162, %s178
      %p180 = scmp.eq.s32.totalorder %s22, 0
      %p181 = por %p179, %p180
      %s182 = ssub.s32 %s24, %s31
      %p183 = scmp.eq.s32.totalorder %s182, 0
      %s185 = sadd.s32 %s184, 1
      %s186 = scalar_select %p183, %s184, %s185
      %p189 = pneg %p183
      %p190 = scmp.eq.s32.totalorder %s16, 7
      %p191 = por %p189, %p190
      %p192 = scmp.ne.s32.totalorder %s184, %s187
      %p193 = scmp.eq.s32.totalorder %s16, 0
      %p194 = por %p192, %p193
      %p195 = scmp.ne.s32.totalorder %s184, %s187
      %p196 = scmp.eq.s32.totalorder %s21, 7
      %p197 = por %p195, %p196
      %p198 = scmp.ne.s32.totalorder %s187, %s188
      %p199 = scmp.eq.s32.totalorder %s21, 0
      %p200 = por %p198, %p199
      %p201 = scmp.ne.s32.totalorder %s187, %s188
      %p202 = scmp.eq.s32.totalorder %s22, 7
      %p203 = por %p201, %p202
      %p205 = scmp.ne.s32.totalorder %s188, %s204
      %p206 = scmp.eq.s32.totalorder %s22, 0
      %p207 = por %p205, %p206
      %s208 = ssub.s32 %s23, %s35
      %p209 = scmp.eq.s32.totalorder %s208, 0
      %s211 = sadd.s32 %s210, 1
      %s212 = scalar_select %p209, %s210, %s211
      %p215 = pneg %p209
      %p216 = scmp.eq.s32.totalorder %s16, 7
      %p217 = por %p215, %p216
      %p218 = scmp.ne.s32.totalorder %s210, %s213
      %p219 = scmp.eq.s32.totalorder %s16, 0
      %p220 = por %p218, %p219
      %p221 = scmp.ne.s32.totalorder %s210, %s213
      %p222 = scmp.eq.s32.totalorder %s21, 7
      %p223 = por %p221, %p222
      %p224 = scmp.ne.s32.totalorder %s213, %s214
      %p225 = scmp.eq.s32.totalorder %s21, 0
      %p226 = por %p224, %p225
      %p227 = scmp.ne.s32.totalorder %s213, %s214
      %p228 = scmp.eq.s32.totalorder %s22, 7
      %p229 = por %p227, %p228
      %p231 = scmp.ne.s32.totalorder %s214, %s230
      %p232 = scmp.eq.s32.totalorder %s22, 0
      %p233 = por %p231, %p232
      %p234 = scmp.le.s32.totalorder 1, %s16
      %p235 = scmp.lt.s32.totalorder %s16, 9
      %p236 = pnand %p234, %p235
      %p237 = pneg %p236
      // Predicated region
      $region9: #{tpu_custom_call.1} parent=5 // pred_check
        _
      $region10: #{tpu_custom_call.1} parent=5 // pred_check_branch
        %239 = sbr.rel (%p236) target = $region12
      $region11: #{tpu_custom_call.1} parent=5 // pred_region
        %s240 = ssub.s32 %s16, 1
        // Predicated region
        $region13: #{tpu_custom_call.1} parent=11 // pred_check
          %p241 = pneg %p101
        $region14: #{tpu_custom_call.1} parent=11 // pred_check_branch
          %243 = sbr.rel (%p241) target = $region16
        $region15: #{tpu_custom_call.1} parent=11 // pred_region
          _
        $region16: #{tpu_custom_call.1} parent=11 // pred_fallthru
          _
        // Predicated region
        $region17: #{tpu_custom_call.1} parent=11 // pred_check
          %p244 = pneg %p122
        $region18: #{tpu_custom_call.1} parent=11 // pred_check_branch
          %246 = sbr.rel (%p244) target = $region20
        $region19: #{tpu_custom_call.1} parent=11 // pred_region
          _
        $region20: #{tpu_custom_call.1} parent=11 // pred_fallthru
          _
      $region12: #{tpu_custom_call.1} parent=5 // pred_fallthru
        _
      %p247 = scmp.lt.s32.totalorder %s16, 8
      // Predicated region
      $region21: #{tpu_custom_call.1} parent=5 // pred_check
        %p248 = pneg %p247
      $region22: #{tpu_custom_call.1} parent=5 // pred_check_branch
        %250 = sbr.rel (%p248) target = $region24
      $region23: #{tpu_custom_call.1} parent=5 // pred_region
        // Predicated region
        $region25: #{tpu_custom_call.1} parent=23 // pred_check
          %p251 = pneg %p48
        $region26: #{tpu_custom_call.1} parent=23 // pred_check_branch
          %253 = sbr.rel (%p251) target = $region28
        $region27: #{tpu_custom_call.1} parent=23 // pred_region
          %p254 = scmp.lt.s32.totalorder %s23, 1
          %s255 = scalar_select %p254, %s23, 1
          %s256 = smul.addr %s255, 8
          %s257 = scalar_lea.vmem %s0, %s256
        $region28: #{tpu_custom_call.1} parent=23 // pred_fallthru
          _
        // Predicated region
        $region29: #{tpu_custom_call.1} parent=23 // pred_check
          %p258 = pneg %p74
        $region30: #{tpu_custom_call.1} parent=23 // pred_check_branch
          %260 = sbr.rel (%p258) target = $region32
        $region31: #{tpu_custom_call.1} parent=23 // pred_region
          %p261 = scmp.lt.s32.totalorder %s23, 1
          %s262 = scalar_select %p261, %s23, 1
          %s263 = scalar_lea.vmem %s1, %s262
        $region32: #{tpu_custom_call.1} parent=23 // pred_fallthru
          _
        // Predicated region
        $region33: #{tpu_custom_call.1} parent=23 // pred_check
          %p264 = pneg %p142
        $region34: #{tpu_custom_call.1} parent=23 // pred_check_branch
          %266 = sbr.rel (%p264) target = $region36
        $region35: #{tpu_custom_call.1} parent=23 // pred_region
          %s267 = sand.u32 %s132, 1
          %s268 = sand.u32 %s132, 1
          %s269 = smul.addr %s268, 64
          %s270 = scalar_lea.vmem [#allocation4], %s269
          %s271 = smul.u32 4, %s24
          %s272 = smul.addr %s271, 4
          %s273 = scalar_lea.vmem %s4, %s272
          // Predicated region
          $region37: #{tpu_custom_call.1} parent=35 // pred_check
            _
          $region38: #{tpu_custom_call.1} parent=35 // pred_check_branch
            %275 = sbr.rel (0) target = $region40
          $region39: #{tpu_custom_call.1} parent=35 // pred_region
            // Predicated region
            $region41: #{tpu_custom_call.1} parent=39 // pred_check
              _
            $region42: #{tpu_custom_call.1} parent=39 // pred_check_branch
              %277 = sbr.rel (0) target = $region44
            $region43: #{tpu_custom_call.1} parent=39 // pred_region
              loop: start=0, step=1, limit=1
              $region45: #{tpu_custom_call.1} parent=43 // loop_pre_header
                _
              $region46: #{tpu_custom_call.1} parent=43 // loop_header
                %s279 = sphi 0, %s283
                %p280 = scmp.ge.s32.totalorder %s279, 1
                %s284 = sphi %s273, %s273
                %s285 = sphi %s270, %s270
              $region47: #{tpu_custom_call.1} parent=43 // loop_header_branch
                %282 = sbr.rel (%p280) target = $region51
              $region48: #{tpu_custom_call.1} parent=43 // loop_body
                %v286 = vld [vmem:[%s284] sm:$0xff]
                %287 = vst [vmem:[%s285] sm:$0xff] %v286
                %v288 = vld [vmem:[%s284 + $0x8] sm:$0xff]
                %289 = vst [vmem:[%s285 + $0x8] sm:$0xff] %v288
                %v290 = vld [vmem:[%s284 + $0x40] sm:$0xff]
                %291 = vst [vmem:[%s285 + $0x10] sm:$0xff] %v290
                %v292 = vld [vmem:[%s284 + $0x48] sm:$0xff]
                %293 = vst [vmem:[%s285 + $0x18] sm:$0xff] %v292
                %v294 = vld [vmem:[%s284 + $0x80] sm:$0xff]
                %295 = vst [vmem:[%s285 + $0x20] sm:$0xff] %v294
                %v296 = vld [vmem:[%s284 + $0x88] sm:$0xff]
                %297 = vst [vmem:[%s285 + $0x28] sm:$0xff] %v296
                %v298 = vld [vmem:[%s284 + $0xc0] sm:$0xff]
                %299 = vst [vmem:[%s285 + $0x30] sm:$0xff] %v298
                %v300 = vld [vmem:[%s284 + $0xc8] sm:$0xff]
                %301 = vst [vmem:[%s285 + $0x38] sm:$0xff] %v300
              $region49: #{tpu_custom_call.1} parent=43 // loop_footer
                %s283 = sadd.s32 1, %s279
              $region50: #{tpu_custom_call.1} parent=43 // loop_footer_branch
                %278 = sbr.rel target = $region46
              $region51: #{tpu_custom_call.1} parent=43 // loop_exit
                _
            $region44: #{tpu_custom_call.1} parent=39 // pred_fallthru
              _
            // Predicated region
            $region52: #{tpu_custom_call.1} parent=39 // pred_check
              _
            $region53: #{tpu_custom_call.1} parent=39 // pred_check_branch
              %303 = sbr.rel target = $region55
            $region54: #{tpu_custom_call.1} parent=39 // pred_region
              _
            $region55: #{tpu_custom_call.1} parent=39 // pred_fallthru
              _
          $region40: #{tpu_custom_call.1} parent=35 // pred_fallthru
            _
          %304 = vnop
        $region36: #{tpu_custom_call.1} parent=23 // pred_fallthru
          _
        // Predicated region
        $region56: #{tpu_custom_call.1} parent=23 // pred_check
          %p305 = pneg %p168
        $region57: #{tpu_custom_call.1} parent=23 // pred_check_branch
          %307 = sbr.rel (%p305) target = $region59
        $region58: #{tpu_custom_call.1} parent=23 // pred_region
          %s308 = smul.u32 4, %s24
          %p309 = scmp.lt.s32.totalorder %s308, 15
          %s310 = scalar_select %p309, %s308, 15
          %s311 = scalar_lea.vmem %s5, %s310
          %s312 = smul.u32 4, %s24
        $region59: #{tpu_custom_call.1} parent=23 // pred_fallthru
          _
        // Predicated region
        $region60: #{tpu_custom_call.1} parent=23 // pred_check
          %p313 = pneg %p194
        $region61: #{tpu_custom_call.1} parent=23 // pred_check_branch
          %315 = sbr.rel (%p313) target = $region63
        $region62: #{tpu_custom_call.1} parent=23 // pred_region
          %s316 = smul.u32 64, %s24
          %p317 = scmp.lt.s32.totalorder %s316, 255
          %s318 = scalar_select %p317, %s316, 255
          %s319 = smul.addr %s318, 4
          %s320 = scalar_lea.vmem %s6, %s319
          %s321 = smul.u32 64, %s24
        $region63: #{tpu_custom_call.1} parent=23 // pred_fallthru
          _
      $region24: #{tpu_custom_call.1} parent=5 // pred_fallthru
        _
      %p322 = scmp.le.s32.totalorder 1, %s16
      %p323 = scmp.lt.s32.totalorder %s16, 9
      %p324 = pnand %p322, %p323
      %p325 = pneg %p324
      // Predicated region
      $region64: #{tpu_custom_call.1} parent=5 // pred_check
        _
      $region65: #{tpu_custom_call.1} parent=5 // pred_check_branch
        %327 = sbr.rel (%p324) target = $region67
      $region66: #{tpu_custom_call.1} parent=5 // pred_region
        %s328 = ssub.s32 %s16, 1
        %s329 = sand.u32 %s135, 1
        %s330 = sand.u32 %s135, 1
        %s331 = smul.addr %s330, 64
        %s332 = scalar_lea.vmem [#allocation4], %s331
        // Predicated region
        $region68: #{tpu_custom_call.1} parent=66 // pred_check
          %p333 = pneg %p148
        $region69: #{tpu_custom_call.1} parent=66 // pred_check_branch
          %335 = sbr.rel (%p333) target = $region71
        $region70: #{tpu_custom_call.1} parent=66 // pred_region
          _
        $region71: #{tpu_custom_call.1} parent=66 // pred_fallthru
          _
        %p336 = scmp.lt.s32.totalorder %s25, 1
        %s337 = scalar_select %p336, %s25, 1
        %s338 = smul.addr %s337, 8
        %s339 = scalar_lea.vmem %s0, %s338
        %p340 = pneg %p54
        %p341 = pneg %p51
        %p342 = scmp.lt.s32.totalorder %s25, 1
        %s343 = scalar_select %p342, %s25, 1
        %s344 = scalar_lea.vmem %s1, %s343
        %p345 = pneg %p80
        %p346 = pneg %p77
        %p347 = pneg %p101
        %p348 = pneg %p98
        %p349 = pneg %p122
        %p350 = pneg %p119
        %s351 = sand.u32 %s135, 1
        %s352 = sand.u32 %s135, 1
        %s353 = smul.addr %s352, 64
        %s354 = scalar_lea.vmem [#allocation4], %s353
        %p355 = pneg %p148
        %p356 = pneg %p145
        %s357 = smul.u32 4, %s26
        %p358 = scmp.lt.s32.totalorder %s357, 15
        %s359 = scalar_select %p358, %s357, 15
        %s360 = scalar_lea.vmem %s5, %s359
        %p361 = pneg %p174
        %p362 = pneg %p171
        %s363 = smul.u32 64, %s26
        %p364 = scmp.lt.s32.totalorder %s363, 255
        %s365 = scalar_select %p364, %s363, 255
        %s366 = smul.addr %s365, 4
        %s367 = scalar_lea.vmem %s6, %s366
        %p368 = pneg %p200
        %p369 = pneg %p197
        %p370 = pneg %p226
        %p371 = pneg %p223
        %s372 = sand.u32 %s213, 1
        %s373 = scalar_lea.sflag [#allocation6], %s372
        %s374 = sand.u32 %s213, 1
        %s375 = smul.addr %s374, 2
        %s376 = scalar_lea.vmem [#allocation5], %s375
        %p377 = scmp.lt.s32.totalorder %s25, 1
        %s378 = scalar_select %p377, %s25, 1
        %s379 = smul.addr %s378, 8
        %s380 = scalar_lea.vmem %s0, %s379
        %p381 = scmp.lt.s32.totalorder %s25, 1
        %s382 = scalar_select %p381, %s25, 1
        %s383 = scalar_lea.vmem %s1, %s382
        %s384 = smul.u32 4, %s26
        %s385 = smul.u32 4, %s26
        %p386 = scmp.lt.s32.totalorder %s385, 15
        %s387 = scalar_select %p386, %s385, 15
        %s388 = scalar_lea.vmem %s5, %s387
        %s389 = smul.u32 4, %s26
        %s390 = smul.u32 64, %s26
        %p391 = scmp.lt.s32.totalorder %s390, 255
        %s392 = scalar_select %p391, %s390, 255
        %s393 = smul.addr %s392, 4
        %s394 = scalar_lea.vmem %s6, %s393
        %s395 = smul.u32 64, %s26
        %p397 = scmp.eq.s32.totalorder %s26, 0
        // Predicated region
        $region72: #{tpu_custom_call.1} parent=66 // pred_check
          %p398 = pneg %p397
        $region73: #{tpu_custom_call.1} parent=66 // pred_check_branch
          %400 = sbr.rel (%p398) target = $region75
        $region74: #{tpu_custom_call.1} parent=66 // pred_region
          %v401 = vld [vmem:[%s380] sm:$0xff]
          %v402 = vld [vmem:[%s3] sm:$0xff]
          %v403 = vld [vmem:[%s383] sm:$0x1]
          %vm404 = vcmask 261120
          %v405 = vsel %vm404, %v401, 0.0
          %406 = vadd.xlane.f32.xlu0 %v405
          %v407 = vpop.xlane.xlu0 %406
          %v408 = vrcp.pop 32.0
          %v409 = vmul.f32 32.0, %v408
          %v410 = vsub.f32 1.0, %v409
          %v411 = vmul.f32 %v408, %v410
          %v412 = vadd.f32 %v408, %v411
          %vm413 = vweird.f32 %v408
          %v414 = vsel %vm413, %v408, %v412
          %v415 = vmul.f32 %v407, %v414
          %v416 = vsub.f32 %v401, %v415
          %v417 = vmul.f32 %v416, %v416
          %v418 = vsel %vm404, %v417, 0.0
          %419 = vadd.xlane.f32.xlu0 %v418
          %v420 = vpop.xlane.xlu0 %419
          %v421 = vmul.f32 %v420, 0.032258064
          %v422 = vrsqrt.pop %v421
          %v423 = vmul.f32 %v422, %v421
          %v424 = vmul.f32 %v423, %v422
          %v425 = vmul.f32 0.5, %v424
          %v426 = vsub.f32 1.5, %v425
          %v427 = vmul.f32 %v422, %v426
          %v428 = vmul.f32 %v421, %v427
          %vm429 = vcmp.eq.f32.partialorder %v421, inf
          %v430 = vsel %vm429, %v421, %v428
          %vm431 = vcmp.eq.f32.partialorder %v421, 0.0
          %v432 = vand.u32 %v421, 2147483648
          %v433 = vsel %vm431, %v432, %v430
          %v434 = vperm.slane %v402, 0
          %v435 = vmul.f32 %v434, %v416
          %v436 = vadd.f32 %v433, 1e-06
          %v437 = vrcp.pop %v436
          %v438 = vmul.f32 %v436, %v437
          %v439 = vsub.f32 1.0, %v438
          %v440 = vmul.f32 %v437, %v439
          %v441 = vadd.f32 %v437, %v440
          %vm442 = vweird.f32 %v436
          %vm443 = vweird.f32 %v437
          %vm444 = vmor %vm442, %vm443
          %v445 = vsel %vm444, %v437, %v441
          %v446 = vand.u32 2147483647, %v436
          %vm447 = vcmp.eq.f32.partialorder %v446, 8.507059e+37
          %v448 = vand.u32 %v436, 2147483648
          %v449 = vor.u32 1.1754944e-38, %v448
          %v450 = vsel %vm447, %v449, %v445
          %v451 = vmul.f32 %v435, %v450
          %v452 = vperm.slane %v402, 1
          %v453 = vadd.f32 %v451, %v452
          %v454 = vpack.c.bf16 %v453, %v453
          %v455 = vld [vmem:[%s2] sm:$0xf]
          %v456 = vld [vmem:[%s2 + $0x4] sm:$0xf]
          %v457 = vld [vmem:[%s2 + $0x8] sm:$0xf]
          %v458 = vld [vmem:[%s2 + $0xc] sm:$0xf]
          %v459 = vperm.slane %v402, 4
          %v464 = vunpack.c.l.b16 %v455
          %v465 = vunpack.c.l.b16 %v456
          %v466 = vunpack.c.l.b16 %v457
          %v467 = vunpack.c.l.b16 %v458
          %v468 = vpack.c.b16 %v465, %v464
          %v469 = vpack.c.b16 %v467, %v466
          %v473 = vsel %vm404, %v454, 0
          %475 = vmatpush.bf16.msra.mxu0 0
          %476 = vmatpush.bf16.msra.mxu0 0
          %477 = vmatpush.bf16.msra.mxu0 0
          %478 = vmatpush.bf16.msra.mxu0 0
          %479 = vmatpush.bf16.msra.mxu0 0
          %480 = vmatpush.bf16.msra.mxu0 0
          %481 = vmatpush.bf16.msra.mxu0 %v469
          %482 = vmatpush.bf16.msra.mxu0 %v468
          %483 = vmatmul.bf16.gmra.mxu0 %v473
          %v484 = vpop.f32.mrf.mxu0
          %v485 = vadd.f32 %v459, %v484
          %v486 = vpop.f32.mrf.mxu0
          %487 = vdwg.mxu0
          %s488 = scalar_lea.vmem %s2, 16
          %v489 = vld [vmem:[%s488] sm:$0xf]
          %v490 = vld [vmem:[%s488 + $0x4] sm:$0xf]
          %v491 = vld [vmem:[%s488 + $0x8] sm:$0xf]
          %v492 = vld [vmem:[%s488 + $0xc] sm:$0xf]
          %v493 = vperm.slane %v402, 5
          %v498 = vunpack.c.l.b16 %v489
          %v499 = vunpack.c.l.b16 %v490
          %v500 = vunpack.c.l.b16 %v491
          %v501 = vunpack.c.l.b16 %v492
          %v502 = vpack.c.b16 %v499, %v498
          %v503 = vpack.c.b16 %v501, %v500
          %506 = vmatpush.bf16.msra.mxu0 0
          %507 = vmatpush.bf16.msra.mxu0 0
          %508 = vmatpush.bf16.msra.mxu0 0
          %509 = vmatpush.bf16.msra.mxu0 0
          %510 = vmatpush.bf16.msra.mxu0 0
          %511 = vmatpush.bf16.msra.mxu0 0
          %512 = vmatpush.bf16.msra.mxu0 %v503
          %513 = vmatpush.bf16.msra.mxu0 %v502
          %514 = vmatmul.bf16.gmra.mxu0 %v473
          %v515 = vpop.f32.mrf.mxu0
          %v516 = vadd.f32 %v493, %v515
          %v517 = vpop.f32.mrf.mxu0
          %518 = vdwg.mxu0
          %s519 = scalar_lea.vmem %s2, 32
          %v520 = vld [vmem:[%s519] sm:$0xf]
          %v521 = vld [vmem:[%s519 + $0x4] sm:$0xf]
          %v522 = vld [vmem:[%s519 + $0x8] sm:$0xf]
          %v523 = vld [vmem:[%s519 + $0xc] sm:$0xf]
          %v524 = vperm.slane %v402, 6
          %v529 = vunpack.c.l.b16 %v520
          %v530 = vunpack.c.l.b16 %v521
          %v531 = vunpack.c.l.b16 %v522
          %v532 = vunpack.c.l.b16 %v523
          %v533 = vpack.c.b16 %v530, %v529
          %v534 = vpack.c.b16 %v532, %v531
          %537 = vmatpush.bf16.msra.mxu0 0
          %538 = vmatpush.bf16.msra.mxu0 0
          %539 = vmatpush.bf16.msra.mxu0 0
          %540 = vmatpush.bf16.msra.mxu0 0
          %541 = vmatpush.bf16.msra.mxu0 0
          %542 = vmatpush.bf16.msra.mxu0 0
          %543 = vmatpush.bf16.msra.mxu0 %v534
          %544 = vmatpush.bf16.msra.mxu0 %v533
          %545 = vmatmul.bf16.gmra.mxu0 %v473
          %v546 = vpop.f32.mrf.mxu0
          %v547 = vadd.f32 %v524, %v546
          %v548 = vpop.f32.mrf.mxu0
          %549 = vdwg.mxu0
          %551 = vrot.lane.b32.xlu0 %v485, 120
          %v552 = vpop.permute.xlu0 %551
          %554 = vrot.lane.b32.xlu0 %v485, 112
          %v555 = vpop.permute.xlu0 %554
          %557 = vrot.lane.b32.xlu0 %v485, 104
          %v558 = vpop.permute.xlu0 %557
          %v560 = vpack.c.bf16 %v485, %v485
          %v561 = vpack.c.bf16 %v552, %v552
          %v562 = vpack.c.bf16 %v555, %v555
          %v563 = vpack.c.bf16 %v558, %v558
          %565 = vrot.lane.b32.xlu0 %v516, 120
          %v566 = vpop.permute.xlu0 %565
          %568 = vrot.lane.b32.xlu0 %v516, 112
          %v569 = vpop.permute.xlu0 %568
          %571 = vrot.lane.b32.xlu0 %v516, 104
          %v572 = vpop.permute.xlu0 %571
          %v574 = vpack.c.bf16 %v516, %v516
          %v575 = vpack.c.bf16 %v566, %v566
          %v576 = vpack.c.bf16 %v569, %v569
          %v577 = vpack.c.bf16 %v572, %v572
          %579 = vrot.lane.b32.xlu0 %v547, 120
          %v580 = vpop.permute.xlu0 %579
          %582 = vrot.lane.b32.xlu0 %v547, 112
          %v583 = vpop.permute.xlu0 %582
          %585 = vrot.lane.b32.xlu0 %v547, 104
          %v586 = vpop.permute.xlu0 %585
          %v588 = vpack.c.bf16 %v547, %v547
          %v589 = vpack.c.bf16 %v580, %v580
          %v590 = vpack.c.bf16 %v583, %v583
          %v591 = vpack.c.bf16 %v586, %v586
          %v593 = vperm.slane %v403, 0
          %vm595 = vcmask 64512
          %v597 = vsel %vm595, %v560, 0
          %v600 = vsel %vm595, %v574, 0
          %602 = vmatpush.bf16.xpose.msra.mxu0 0
          %603 = vmatpush.bf16.xpose.msra.mxu0 0
          %604 = vmatpush.bf16.xpose.msra.mxu0 0
          %605 = vmatpush.bf16.xpose.msra.mxu0 0
          %606 = vmatpush.bf16.xpose.msra.mxu0 0
          %607 = vmatpush.bf16.xpose.msra.mxu0 0
          %608 = vmatpush.bf16.xpose.msra.mxu0 0
          %609 = vmatpush.bf16.xpose.msra.mxu0 %v600
          %610 = vmatmul.bf16.gmra.mxu0 %v597
          %v611 = vpop.f32.mrf.mxu0
          %v612 = vadd.f32 %v593, %v611
          %v613 = vpop.f32.mrf.mxu0
          %614 = vdwg.mxu0
          %v616 = vsel %vm595, %v561, 0
          %v619 = vsel %vm595, %v575, 0
          %621 = vmatpush.bf16.xpose.msra.mxu0 0
          %622 = vmatpush.bf16.xpose.msra.mxu0 0
          %623 = vmatpush.bf16.xpose.msra.mxu0 0
          %624 = vmatpush.bf16.xpose.msra.mxu0 0
          %625 = vmatpush.bf16.xpose.msra.mxu0 0
          %626 = vmatpush.bf16.xpose.msra.mxu0 0
          %627 = vmatpush.bf16.xpose.msra.mxu0 0
          %628 = vmatpush.bf16.xpose.msra.mxu0 %v619
          %629 = vmatmul.bf16.gmra.mxu0 %v616
          %v630 = vpop.f32.mrf.mxu0
          %v631 = vadd.f32 %v593, %v630
          %v632 = vpop.f32.mrf.mxu0
          %633 = vdwg.mxu0
          %v635 = vsel %vm595, %v562, 0
          %v638 = vsel %vm595, %v576, 0
          %640 = vmatpush.bf16.xpose.msra.mxu0 0
          %641 = vmatpush.bf16.xpose.msra.mxu0 0
          %642 = vmatpush.bf16.xpose.msra.mxu0 0
          %643 = vmatpush.bf16.xpose.msra.mxu0 0
          %644 = vmatpush.bf16.xpose.msra.mxu0 0
          %645 = vmatpush.bf16.xpose.msra.mxu0 0
          %646 = vmatpush.bf16.xpose.msra.mxu0 0
          %647 = vmatpush.bf16.xpose.msra.mxu0 %v638
          %648 = vmatmul.bf16.gmra.mxu0 %v635
          %v649 = vpop.f32.mrf.mxu0
          %v650 = vadd.f32 %v593, %v649
          %v651 = vpop.f32.mrf.mxu0
          %652 = vdwg.mxu0
          %v654 = vsel %vm595, %v563, 0
          %v657 = vsel %vm595, %v577, 0
          %659 = vmatpush.bf16.xpose.msra.mxu0 0
          %660 = vmatpush.bf16.xpose.msra.mxu0 0
          %661 = vmatpush.bf16.xpose.msra.mxu0 0
          %662 = vmatpush.bf16.xpose.msra.mxu0 0
          %663 = vmatpush.bf16.xpose.msra.mxu0 0
          %664 = vmatpush.bf16.xpose.msra.mxu0 0
          %665 = vmatpush.bf16.xpose.msra.mxu0 0
          %666 = vmatpush.bf16.xpose.msra.mxu0 %v657
          %667 = vmatmul.bf16.gmra.mxu0 %v654
          %v668 = vpop.f32.mrf.mxu0
          %v669 = vadd.f32 %v593, %v668
          %v670 = vpop.f32.mrf.mxu0
          %671 = vdwg.mxu0
          %v672 = vsel %vm595, %v612, -inf
          %673 = vmax.xlane.f32.xlu0 %v672
          %v674 = vpop.xlane.xlu0 %673
          %v675 = vsel %vm595, %v631, -inf
          %676 = vmax.xlane.f32.xlu0 %v675
          %v677 = vpop.xlane.xlu0 %676
          %v678 = vsel %vm595, %v650, -inf
          %679 = vmax.xlane.f32.xlu0 %v678
          %v680 = vpop.xlane.xlu0 %679
          %v681 = vsel %vm595, %v669, -inf
          %682 = vmax.xlane.f32.xlu0 %v681
          %v683 = vpop.xlane.xlu0 %682
          %v684 = vsub.f32 %v612, %v674
          %v685 = vsub.f32 %v631, %v677
          %v686 = vsub.f32 %v650, %v680
          %v687 = vsub.f32 %v669, %v683
          %v688 = vmul.f32 %v684, 1.442695
          %v689 = vpow.pop %v688
          %v690 = vmul.f32 %v685, 1.442695
          %v691 = vpow.pop %v690
          %v692 = vmul.f32 %v686, 1.442695
          %v693 = vpow.pop %v692
          %v694 = vmul.f32 %v687, 1.442695
          %v695 = vpow.pop %v694
          %v696 = vsel %vm595, %v689, 0.0
          %697 = vadd.xlane.f32.xlu0 %v696
          %v698 = vpop.xlane.xlu0 %697
          %v699 = vsel %vm595, %v691, 0.0
          %700 = vadd.xlane.f32.xlu0 %v699
          %v701 = vpop.xlane.xlu0 %700
          %v702 = vsel %vm595, %v693, 0.0
          %703 = vadd.xlane.f32.xlu0 %v702
          %v704 = vpop.xlane.xlu0 %703
          %v705 = vsel %vm595, %v695, 0.0
          %706 = vadd.xlane.f32.xlu0 %v705
          %v707 = vpop.xlane.xlu0 %706
          %v708 = vrcp.pop %v698
          %v709 = vrcp.pop %v701
          %v710 = vrcp.pop %v704
          %v711 = vrcp.pop %v707
          %v712 = vmul.f32 %v689, %v708
          %v713 = vmul.f32 %v691, %v709
          %v714 = vmul.f32 %v693, %v710
          %v715 = vmul.f32 %v695, %v711
          %v716 = vpack.c.bf16 %v712, %v712
          %v717 = vpack.c.bf16 %v713, %v713
          %v718 = vpack.c.bf16 %v714, %v714
          %v719 = vpack.c.bf16 %v715, %v715
          %v721 = vsel %vm595, %v716, 0
          %vm723 = vcmask 1043456
          %v725 = vsel %vm723, %v588, 0
          %727 = vmatpush.bf16.msra.mxu0 0
          %728 = vmatpush.bf16.msra.mxu0 0
          %729 = vmatpush.bf16.msra.mxu0 0
          %730 = vmatpush.bf16.msra.mxu0 0
          %731 = vmatpush.bf16.msra.mxu0 0
          %732 = vmatpush.bf16.msra.mxu0 0
          %733 = vmatpush.bf16.msra.mxu0 0
          %734 = vmatpush.bf16.msra.mxu0 %v725
          %735 = vmatmul.bf16.gmra.mxu0 %v721
          %v736 = vpop.f32.mrf.mxu0
          %v737 = vadd.f32 0.0, %v736
          %v738 = vpop.f32.mrf.mxu0
          %739 = vdwg.mxu0
          %v741 = vsel %vm595, %v717, 0
          %v744 = vsel %vm723, %v589, 0
          %746 = vmatpush.bf16.msra.mxu0 0
          %747 = vmatpush.bf16.msra.mxu0 0
          %748 = vmatpush.bf16.msra.mxu0 0
          %749 = vmatpush.bf16.msra.mxu0 0
          %750 = vmatpush.bf16.msra.mxu0 0
          %751 = vmatpush.bf16.msra.mxu0 0
          %752 = vmatpush.bf16.msra.mxu0 0
          %753 = vmatpush.bf16.msra.mxu0 %v744
          %754 = vmatmul.bf16.gmra.mxu0 %v741
          %v755 = vpop.f32.mrf.mxu0
          %v756 = vadd.f32 0.0, %v755
          %v757 = vpop.f32.mrf.mxu0
          %758 = vdwg.mxu0
          %v760 = vsel %vm595, %v718, 0
          %v763 = vsel %vm723, %v590, 0
          %765 = vmatpush.bf16.msra.mxu0 0
          %766 = vmatpush.bf16.msra.mxu0 0
          %767 = vmatpush.bf16.msra.mxu0 0
          %768 = vmatpush.bf16.msra.mxu0 0
          %769 = vmatpush.bf16.msra.mxu0 0
          %770 = vmatpush.bf16.msra.mxu0 0
          %771 = vmatpush.bf16.msra.mxu0 0
          %772 = vmatpush.bf16.msra.mxu0 %v763
          %773 = vmatmul.bf16.gmra.mxu0 %v760
          %v774 = vpop.f32.mrf.mxu0
          %v775 = vadd.f32 0.0, %v774
          %v776 = vpop.f32.mrf.mxu0
          %777 = vdwg.mxu0
          %v779 = vsel %vm595, %v719, 0
          %v782 = vsel %vm723, %v591, 0
          %784 = vmatpush.bf16.msra.mxu0 0
          %785 = vmatpush.bf16.msra.mxu0 0
          %786 = vmatpush.bf16.msra.mxu0 0
          %787 = vmatpush.bf16.msra.mxu0 0
          %788 = vmatpush.bf16.msra.mxu0 0
          %789 = vmatpush.bf16.msra.mxu0 0
          %790 = vmatpush.bf16.msra.mxu0 0
          %791 = vmatpush.bf16.msra.mxu0 %v782
          %792 = vmatmul.bf16.gmra.mxu0 %v779
          %v793 = vpop.f32.mrf.mxu0
          %v794 = vadd.f32 0.0, %v793
          %v795 = vpop.f32.mrf.mxu0
          %796 = vdwg.mxu0
          %798 = vrot.lane.b32.xlu0 %v756, 8
          %v799 = vpop.permute.xlu0 %798
          %802 = vrot.lane.b32.xlu0 %v775, 16
          %v803 = vpop.permute.xlu0 %802
          %806 = vrot.lane.b32.xlu0 %v794, 24
          %v807 = vpop.permute.xlu0 %806
          %v809 = vsel %vm595, %v737, %v799
          %vm810 = vcmask 130048
          %v811 = vsel %vm810, %v809, %v803
          %vm812 = vcmask 195584
          %v813 = vsel %vm812, %v811, %v807
          %v814 = vpack.c.bf16 %v813, %v813
          %s815 = scalar_lea.vmem %s2, 48
          %v816 = vld [vmem:[%s815] sm:$0xf]
          %v817 = vld [vmem:[%s815 + $0x4] sm:$0xf]
          %v818 = vld [vmem:[%s815 + $0x8] sm:$0xf]
          %v819 = vld [vmem:[%s815 + $0xc] sm:$0xf]
          %v820 = vperm.slane %v402, 7
          %v825 = vunpack.c.l.b16 %v816
          %v826 = vunpack.c.l.b16 %v817
          %v827 = vunpack.c.l.b16 %v818
          %v828 = vunpack.c.l.b16 %v819
          %v829 = vpack.c.b16 %v826, %v825
          %v830 = vpack.c.b16 %v828, %v827
          %v834 = vsel %vm404, %v814, 0
          %836 = vmatpush.bf16.msra.mxu0 0
          %837 = vmatpush.bf16.msra.mxu0 0
          %838 = vmatpush.bf16.msra.mxu0 0
          %839 = vmatpush.bf16.msra.mxu0 0
          %840 = vmatpush.bf16.msra.mxu0 0
          %841 = vmatpush.bf16.msra.mxu0 0
          %842 = vmatpush.bf16.msra.mxu0 %v830
          %843 = vmatpush.bf16.msra.mxu0 %v829
          %844 = vmatmul.bf16.gmra.mxu0 %v834
          %v845 = vpop.f32.mrf.mxu0
          %v846 = vadd.f32 %v820, %v845
          %v847 = vpop.f32.mrf.mxu0
          %848 = vdwg.mxu0
          %v849 = vadd.f32 %v401, %v846
          %v850 = vsel %vm404, %v849, 0.0
          %851 = vadd.xlane.f32.xlu0 %v850
          %v852 = vpop.xlane.xlu0 %851
          %v853 = vmul.f32 %v852, %v414
          %v854 = vsub.f32 %v849, %v853
          %v855 = vmul.f32 %v854, %v854
          %v856 = vsel %vm404, %v855, 0.0
          %857 = vadd.xlane.f32.xlu0 %v856
          %v858 = vpop.xlane.xlu0 %857
          %v859 = vmul.f32 %v858, 0.032258064
          %v860 = vrsqrt.pop %v859
          %v861 = vmul.f32 %v860, %v859
          %v862 = vmul.f32 %v861, %v860
          %v863 = vmul.f32 0.5, %v862
          %v864 = vsub.f32 1.5, %v863
          %v865 = vmul.f32 %v860, %v864
          %v866 = vmul.f32 %v859, %v865
          %vm867 = vcmp.eq.f32.partialorder %v859, inf
          %v868 = vsel %vm867, %v859, %v866
          %vm869 = vcmp.eq.f32.partialorder %v859, 0.0
          %v870 = vand.u32 %v859, 2147483648
          %v871 = vsel %vm869, %v870, %v868
          %v872 = vperm.slane %v402, 2
          %v873 = vmul.f32 %v872, %v854
          %v874 = vadd.f32 %v871, 1e-06
          %v875 = vrcp.pop %v874
          %v876 = vmul.f32 %v874, %v875
          %v877 = vsub.f32 1.0, %v876
          %v878 = vmul.f32 %v875, %v877
          %v879 = vadd.f32 %v875, %v878
          %vm880 = vweird.f32 %v874
          %vm881 = vweird.f32 %v875
          %vm882 = vmor %vm880, %vm881
          %v883 = vsel %vm882, %v875, %v879
          %v884 = vand.u32 2147483647, %v874
          %vm885 = vcmp.eq.f32.partialorder %v884, 8.507059e+37
          %v886 = vand.u32 %v874, 2147483648
          %v887 = vor.u32 1.1754944e-38, %v886
          %v888 = vsel %vm885, %v887, %v883
          %v889 = vmul.f32 %v873, %v888
          %v890 = vperm.slane %v402, 3
          %v891 = vadd.f32 %v889, %v890
          %v892 = vlaneseq
          %v893 = vshrl.u32 %v892, 7
          %v894 = vlaneseq
          %v895 = vand.u32 %v894, 127
          %v896 = vmul.u32 %v893, 2
          %vm897 = vcmp.eq.s32.totalorder %v895, %v896
          %v898 = vadd.s32 %v896, 1
          %vm899 = vcmp.eq.s32.totalorder %v895, %v898
          %vm900 = vmor %vm897, %vm899
          %v901 = vsel %vm900, 0.5, 0.0
          %903 = vrot.lane.b32.xlu0 %v891, 32
          %v904 = vpop.permute.xlu0 %903
          %v906 = vsel %vm404, %v849, %v904
          %v908 = vsel %vm595, %v901, 0
          %910 = vmatpush.msra.mxu0 0.0
          %911 = vmatpush.msra.mxu0 0.0
          %912 = vmatpush.msra.mxu0 0.0
          %913 = vmatpush.msra.mxu0 0.0
          %914 = vmatpush.msra.mxu0 0.0
          %915 = vmatpush.msra.mxu0 0.0
          %916 = vmatpush.msra.mxu0 0.0
          %917 = vmatpush.msra.mxu0 0.0
          %918 = vmatpush.msra.mxu0 0.0
          %919 = vmatpush.msra.mxu0 0.0
          %920 = vmatpush.msra.mxu0 0.0
          %921 = vmatpush.msra.mxu0 0.0
          %922 = vmatpush.msra.mxu0 0.0
          %923 = vmatpush.msra.mxu0 0.0
          %924 = vmatpush.msra.mxu0 0.0
          %925 = vmatpush.msra.mxu0 %v906
          %926 = vmatmul.f32.gmra.mxu0 %v908
          %v927 = vpop.f32.mrf.mxu0
          %v928 = vadd.f32 0.0, %v927
          %929 = vdwg.mxu0
          %vm930 = vcmask 519168
          %931 = vst.msk [vmem:[#allocation2] sm:$0xf] %vm930, %v928
          %vm932 = vcmask 257024
          %933 = vst.msk [vmem:[#allocation3] sm:$0xf] %vm932, 0.0
        $region75: #{tpu_custom_call.1} parent=66 // pred_fallthru
          _
        %v934 = vld [vmem:[#allocation2] sm:$0xf]
        %v935 = vpack.c.bf16 %v934, %v934
        %v936 = vld [vmem:[%s332] sm:$0xff]
        %v937 = vld [vmem:[%s332 + $0x8] sm:$0xff]
        %v938 = vld [vmem:[%s332 + $0x10] sm:$0xff]
        %v939 = vld [vmem:[%s332 + $0x18] sm:$0xff]
        %v940 = vld [vmem:[%s332 + $0x20] sm:$0xff]
        %v941 = vld [vmem:[%s332 + $0x28] sm:$0xff]
        %v942 = vld [vmem:[%s332 + $0x30] sm:$0xff]
        %v943 = vld [vmem:[%s332 + $0x38] sm:$0xff]
        %v944 = vld [vmem:[%s388] sm:$0xf]
        %v946 = vperm.slane %v944, 0
        %v947 = vperm.slane %v944, 1
        %v948 = vperm.slane %v944, 2
        %v949 = vperm.slane %v944, 3
        %955 = vrot.lane.b32.xlu0 %v935, 96
        %v956 = vpop.permute.xlu0 %955
        %v965 = vunpack.c.l.b16 %v936
        %v966 = vunpack.c.h.b16 %v936
        %v967 = vunpack.c.l.b16 %v937
        %v968 = vunpack.c.h.b16 %v937
        %v969 = vunpack.c.l.b16 %v938
        %v970 = vunpack.c.h.b16 %v938
        %v971 = vunpack.c.l.b16 %v939
        %v972 = vunpack.c.h.b16 %v939
        %v973 = vunpack.c.l.b16 %v940
        %v974 = vunpack.c.h.b16 %v940
        %v975 = vunpack.c.l.b16 %v941
        %v976 = vunpack.c.h.b16 %v941
        %v977 = vunpack.c.l.b16 %v942
        %v978 = vunpack.c.h.b16 %v942
        %v979 = vunpack.c.l.b16 %v943
        %v980 = vunpack.c.h.b16 %v943
        %v981 = vpack.c.b16 %v969, %v965
        %v982 = vpack.c.b16 %v970, %v966
        %v983 = vpack.c.b16 %v971, %v967
        %v984 = vpack.c.b16 %v972, %v968
        %v985 = vpack.c.b16 %v977, %v973
        %v986 = vpack.c.b16 %v978, %v974
        %v987 = vpack.c.b16 %v979, %v975
        %v988 = vpack.c.b16 %v980, %v976
        %vm997 = vcmask 261120
        %v999 = vsel %vm997, %v956, 0
        %1001 = vmatpush.bf16.msra.mxu0 0
        %1002 = vmatpush.bf16.msra.mxu0 0
        %1003 = vmatpush.bf16.msra.mxu0 0
        %1004 = vmatpush.bf16.msra.mxu0 0
        %1005 = vmatpush.bf16.msra.mxu0 0
        %1006 = vmatpush.bf16.msra.mxu0 0
        %1007 = vmatpush.bf16.msra.mxu0 %v985
        %1008 = vmatpush.bf16.msra.mxu0 %v981
        %1009 = vmatmul.bf16.gmra.mxu0 %v999
        %v1010 = vpop.f32.mrf.mxu0
        %v1011 = vadd.f32 %v946, %v1010
        %v1012 = vpop.f32.mrf.mxu0
        %1013 = vdwg.mxu0
        %1014 = vmatpush.bf16.msra.mxu0 0
        %1015 = vmatpush.bf16.msra.mxu0 0
        %1016 = vmatpush.bf16.msra.mxu0 0
        %1017 = vmatpush.bf16.msra.mxu0 0
        %1018 = vmatpush.bf16.msra.mxu0 0
        %1019 = vmatpush.bf16.msra.mxu0 0
        %1020 = vmatpush.bf16.msra.mxu0 %v986
        %1021 = vmatpush.bf16.msra.mxu0 %v982
        %1022 = vmatmul.bf16.gmra.mxu0 %v999
        %v1023 = vpop.f32.mrf.mxu0
        %v1024 = vadd.f32 %v947, %v1023
        %v1025 = vpop.f32.mrf.mxu0
        %1026 = vdwg.mxu0
        %1027 = vmatpush.bf16.msra.mxu0 0
        %1028 = vmatpush.bf16.msra.mxu0 0
        %1029 = vmatpush.bf16.msra.mxu0 0
        %1030 = vmatpush.bf16.msra.mxu0 0
        %1031 = vmatpush.bf16.msra.mxu0 0
        %1032 = vmatpush.bf16.msra.mxu0 0
        %1033 = vmatpush.bf16.msra.mxu0 %v987
        %1034 = vmatpush.bf16.msra.mxu0 %v983
        %1035 = vmatmul.bf16.gmra.mxu0 %v999
        %v1036 = vpop.f32.mrf.mxu0
        %v1037 = vadd.f32 %v948, %v1036
        %v1038 = vpop.f32.mrf.mxu0
        %1039 = vdwg.mxu0
        %1040 = vmatpush.bf16.msra.mxu0 0
        %1041 = vmatpush.bf16.msra.mxu0 0
        %1042 = vmatpush.bf16.msra.mxu0 0
        %1043 = vmatpush.bf16.msra.mxu0 0
        %1044 = vmatpush.bf16.msra.mxu0 0
        %1045 = vmatpush.bf16.msra.mxu0 0
        %1046 = vmatpush.bf16.msra.mxu0 %v988
        %1047 = vmatpush.bf16.msra.mxu0 %v984
        %1048 = vmatmul.bf16.gmra.mxu0 %v999
        %v1049 = vpop.f32.mrf.mxu0
        %v1050 = vadd.f32 %v949, %v1049
        %v1051 = vpop.f32.mrf.mxu0
        %1052 = vdwg.mxu0
        %v1053 = vmax.f32 %v1011, 0.0
        %v1054 = vmax.f32 %v1024, 0.0
        %v1055 = vmax.f32 %v1037, 0.0
        %v1056 = vmax.f32 %v1050, 0.0
        %v1057 = vld [vmem:[#allocation3] sm:$0xf]
        %v1058 = vpack.c.bf16 %v1053, %v1053
        %v1059 = vpack.c.bf16 %v1054, %v1054
        %v1060 = vpack.c.bf16 %v1055, %v1055
        %v1061 = vpack.c.bf16 %v1056, %v1056
        %v1062 = vld [vmem:[%s394] sm:$0xf]
        %v1063 = vld [vmem:[%s394 + $0x4] sm:$0xf]
        %v1064 = vld [vmem:[%s394 + $0x8] sm:$0xf]
        %v1065 = vld [vmem:[%s394 + $0xc] sm:$0xf]
        %v1066 = vld [vmem:[%s394 + $0x10] sm:$0xf]
        %v1067 = vld [vmem:[%s394 + $0x14] sm:$0xf]
        %v1068 = vld [vmem:[%s394 + $0x18] sm:$0xf]
        %v1069 = vld [vmem:[%s394 + $0x1c] sm:$0xf]
        %v1070 = vld [vmem:[%s394 + $0x20] sm:$0xf]
        %v1071 = vld [vmem:[%s394 + $0x24] sm:$0xf]
        %v1072 = vld [vmem:[%s394 + $0x28] sm:$0xf]
        %v1073 = vld [vmem:[%s394 + $0x2c] sm:$0xf]
        %v1074 = vld [vmem:[%s394 + $0x30] sm:$0xf]
        %v1075 = vld [vmem:[%s394 + $0x34] sm:$0xf]
        %v1076 = vld [vmem:[%s394 + $0x38] sm:$0xf]
        %v1077 = vld [vmem:[%s394 + $0x3c] sm:$0xf]
        %v1078 = vld [vmem:[%s394 + $0x40] sm:$0xf]
        %v1079 = vld [vmem:[%s394 + $0x44] sm:$0xf]
        %v1080 = vld [vmem:[%s394 + $0x48] sm:$0xf]
        %v1081 = vld [vmem:[%s394 + $0x4c] sm:$0xf]
        %v1082 = vld [vmem:[%s394 + $0x50] sm:$0xf]
        %v1083 = vld [vmem:[%s394 + $0x54] sm:$0xf]
        %v1084 = vld [vmem:[%s394 + $0x58] sm:$0xf]
        %v1085 = vld [vmem:[%s394 + $0x5c] sm:$0xf]
        %v1086 = vld [vmem:[%s394 + $0x60] sm:$0xf]
        %v1087 = vld [vmem:[%s394 + $0x64] sm:$0xf]
        %v1088 = vld [vmem:[%s394 + $0x68] sm:$0xf]
        %v1089 = vld [vmem:[%s394 + $0x6c] sm:$0xf]
        %v1090 = vld [vmem:[%s394 + $0x70] sm:$0xf]
        %v1091 = vld [vmem:[%s394 + $0x74] sm:$0xf]
        %v1092 = vld [vmem:[%s394 + $0x78] sm:$0xf]
        %v1093 = vld [vmem:[%s394 + $0x7c] sm:$0xf]
        %v1094 = vld [vmem:[%s394 + $0x80] sm:$0xf]
        %v1095 = vld [vmem:[%s394 + $0x84] sm:$0xf]
        %v1096 = vld [vmem:[%s394 + $0x88] sm:$0xf]
        %v1097 = vld [vmem:[%s394 + $0x8c] sm:$0xf]
        %v1098 = vld [vmem:[%s394 + $0x90] sm:$0xf]
        %v1099 = vld [vmem:[%s394 + $0x94] sm:$0xf]
        %v1100 = vld [vmem:[%s394 + $0x98] sm:$0xf]
        %v1101 = vld [vmem:[%s394 + $0x9c] sm:$0xf]
        %v1102 = vld [vmem:[%s394 + $0xa0] sm:$0xf]
        %v1103 = vld [vmem:[%s394 + $0xa4] sm:$0xf]
        %v1104 = vld [vmem:[%s394 + $0xa8] sm:$0xf]
        %v1105 = vld [vmem:[%s394 + $0xac] sm:$0xf]
        %v1106 = vld [vmem:[%s394 + $0xb0] sm:$0xf]
        %v1107 = vld [vmem:[%s394 + $0xb4] sm:$0xf]
        %v1108 = vld [vmem:[%s394 + $0xb8] sm:$0xf]
        %v1109 = vld [vmem:[%s394 + $0xbc] sm:$0xf]
        %v1110 = vld [vmem:[%s394 + $0xc0] sm:$0xf]
        %v1111 = vld [vmem:[%s394 + $0xc4] sm:$0xf]
        %v1112 = vld [vmem:[%s394 + $0xc8] sm:$0xf]
        %v1113 = vld [vmem:[%s394 + $0xcc] sm:$0xf]
        %v1114 = vld [vmem:[%s394 + $0xd0] sm:$0xf]
        %v1115 = vld [vmem:[%s394 + $0xd4] sm:$0xf]
        %v1116 = vld [vmem:[%s394 + $0xd8] sm:$0xf]
        %v1117 = vld [vmem:[%s394 + $0xdc] sm:$0xf]
        %v1118 = vld [vmem:[%s394 + $0xe0] sm:$0xf]
        %v1119 = vld [vmem:[%s394 + $0xe4] sm:$0xf]
        %v1120 = vld [vmem:[%s394 + $0xe8] sm:$0xf]
        %v1121 = vld [vmem:[%s394 + $0xec] sm:$0xf]
        %v1122 = vld [vmem:[%s394 + $0xf0] sm:$0xf]
        %v1123 = vld [vmem:[%s394 + $0xf4] sm:$0xf]
        %v1124 = vld [vmem:[%s394 + $0xf8] sm:$0xf]
        %v1125 = vld [vmem:[%s394 + $0xfc] sm:$0xf]
        %v1190 = vunpack.c.l.b16 %v1062
        %v1191 = vunpack.c.l.b16 %v1063
        %v1192 = vunpack.c.l.b16 %v1064
        %v1193 = vunpack.c.l.b16 %v1065
        %v1194 = vunpack.c.l.b16 %v1066
        %v1195 = vunpack.c.l.b16 %v1067
        %v1196 = vunpack.c.l.b16 %v1068
        %v1197 = vunpack.c.l.b16 %v1069
        %v1198 = vunpack.c.l.b16 %v1070
        %v1199 = vunpack.c.l.b16 %v1071
        %v1200 = vunpack.c.l.b16 %v1072
        %v1201 = vunpack.c.l.b16 %v1073
        %v1202 = vunpack.c.l.b16 %v1074
        %v1203 = vunpack.c.l.b16 %v1075
        %v1204 = vunpack.c.l.b16 %v1076
        %v1205 = vunpack.c.l.b16 %v1077
        %v1206 = vunpack.c.l.b16 %v1078
        %v1207 = vunpack.c.l.b16 %v1079
        %v1208 = vunpack.c.l.b16 %v1080
        %v1209 = vunpack.c.l.b16 %v1081
        %v1210 = vunpack.c.l.b16 %v1082
        %v1211 = vunpack.c.l.b16 %v1083
        %v1212 = vunpack.c.l.b16 %v1084
        %v1213 = vunpack.c.l.b16 %v1085
        %v1214 = vunpack.c.l.b16 %v1086
        %v1215 = vunpack.c.l.b16 %v1087
        %v1216 = vunpack.c.l.b16 %v1088
        %v1217 = vunpack.c.l.b16 %v1089
        %v1218 = vunpack.c.l.b16 %v1090
        %v1219 = vunpack.c.l.b16 %v1091
        %v1220 = vunpack.c.l.b16 %v1092
        %v1221 = vunpack.c.l.b16 %v1093
        %v1222 = vunpack.c.l.b16 %v1094
        %v1223 = vunpack.c.l.b16 %v1095
        %v1224 = vunpack.c.l.b16 %v1096
        %v1225 = vunpack.c.l.b16 %v1097
        %v1226 = vunpack.c.l.b16 %v1098
        %v1227 = vunpack.c.l.b16 %v1099
        %v1228 = vunpack.c.l.b16 %v1100
        %v1229 = vunpack.c.l.b16 %v1101
        %v1230 = vunpack.c.l.b16 %v1102
        %v1231 = vunpack.c.l.b16 %v1103
        %v1232 = vunpack.c.l.b16 %v1104
        %v1233 = vunpack.c.l.b16 %v1105
        %v1234 = vunpack.c.l.b16 %v1106
        %v1235 = vunpack.c.l.b16 %v1107
        %v1236 = vunpack.c.l.b16 %v1108
        %v1237 = vunpack.c.l.b16 %v1109
        %v1238 = vunpack.c.l.b16 %v1110
        %v1239 = vunpack.c.l.b16 %v1111
        %v1240 = vunpack.c.l.b16 %v1112
        %v1241 = vunpack.c.l.b16 %v1113
        %v1242 = vunpack.c.l.b16 %v1114
        %v1243 = vunpack.c.l.b16 %v1115
        %v1244 = vunpack.c.l.b16 %v1116
        %v1245 = vunpack.c.l.b16 %v1117
        %v1246 = vunpack.c.l.b16 %v1118
        %v1247 = vunpack.c.l.b16 %v1119
        %v1248 = vunpack.c.l.b16 %v1120
        %v1249 = vunpack.c.l.b16 %v1121
        %v1250 = vunpack.c.l.b16 %v1122
        %v1251 = vunpack.c.l.b16 %v1123
        %v1252 = vunpack.c.l.b16 %v1124
        %v1253 = vunpack.c.l.b16 %v1125
        %v1254 = vpack.c.b16 %v1191, %v1190
        %v1255 = vpack.c.b16 %v1193, %v1192
        %v1256 = vpack.c.b16 %v1195, %v1194
        %v1257 = vpack.c.b16 %v1197, %v1196
        %v1258 = vpack.c.b16 %v1199, %v1198
        %v1259 = vpack.c.b16 %v1201, %v1200
        %v1260 = vpack.c.b16 %v1203, %v1202
        %v1261 = vpack.c.b16 %v1205, %v1204
        %v1262 = vpack.c.b16 %v1207, %v1206
        %v1263 = vpack.c.b16 %v1209, %v1208
        %v1264 = vpack.c.b16 %v1211, %v1210
        %v1265 = vpack.c.b16 %v1213, %v1212
        %v1266 = vpack.c.b16 %v1215, %v1214
        %v1267 = vpack.c.b16 %v1217, %v1216
        %v1268 = vpack.c.b16 %v1219, %v1218
        %v1269 = vpack.c.b16 %v1221, %v1220
        %v1270 = vpack.c.b16 %v1223, %v1222
        %v1271 = vpack.c.b16 %v1225, %v1224
        %v1272 = vpack.c.b16 %v1227, %v1226
        %v1273 = vpack.c.b16 %v1229, %v1228
        %v1274 = vpack.c.b16 %v1231, %v1230
        %v1275 = vpack.c.b16 %v1233, %v1232
        %v1276 = vpack.c.b16 %v1235, %v1234
        %v1277 = vpack.c.b16 %v1237, %v1236
        %v1278 = vpack.c.b16 %v1239, %v1238
        %v1279 = vpack.c.b16 %v1241, %v1240
        %v1280 = vpack.c.b16 %v1243, %v1242
        %v1281 = vpack.c.b16 %v1245, %v1244
        %v1282 = vpack.c.b16 %v1247, %v1246
        %v1283 = vpack.c.b16 %v1249, %v1248
        %v1284 = vpack.c.b16 %v1251, %v1250
        %v1285 = vpack.c.b16 %v1253, %v1252
        %1318 = vmatpush.bf16.msra.mxu0 %v1261
        %1319 = vmatpush.bf16.msra.mxu0 %v1260
        %1320 = vmatpush.bf16.msra.mxu0 %v1259
        %1321 = vmatpush.bf16.msra.mxu0 %v1258
        %1322 = vmatpush.bf16.msra.mxu0 %v1257
        %1323 = vmatpush.bf16.msra.mxu0 %v1256
        %1324 = vmatpush.bf16.msra.mxu0 %v1255
        %1325 = vmatpush.bf16.msra.mxu0 %v1254
        %1326 = vmatmul.bf16.gmra.mxu0 %v1058
        %v1327 = vpop.f32.mrf.mxu0
        %v1328 = vadd.f32 0.0, %v1327
        %v1329 = vpop.f32.mrf.mxu0
        %1330 = vdwg.mxu0
        %1331 = vmatpush.bf16.msra.mxu0 %v1269
        %1332 = vmatpush.bf16.msra.mxu0 %v1268
        %1333 = vmatpush.bf16.msra.mxu0 %v1267
        %1334 = vmatpush.bf16.msra.mxu0 %v1266
        %1335 = vmatpush.bf16.msra.mxu0 %v1265
        %1336 = vmatpush.bf16.msra.mxu0 %v1264
        %1337 = vmatpush.bf16.msra.mxu0 %v1263
        %1338 = vmatpush.bf16.msra.mxu0 %v1262
        %1339 = vmatmul.bf16.gmra.mxu0 %v1059
        %v1340 = vpop.f32.mrf.mxu0
        %v1341 = vadd.f32 %v1328, %v1340
        %v1342 = vpop.f32.mrf.mxu0
        %1343 = vdwg.mxu0
        %1344 = vmatpush.bf16.msra.mxu0 %v1277
        %1345 = vmatpush.bf16.msra.mxu0 %v1276
        %1346 = vmatpush.bf16.msra.mxu0 %v1275
        %1347 = vmatpush.bf16.msra.mxu0 %v1274
        %1348 = vmatpush.bf16.msra.mxu0 %v1273
        %1349 = vmatpush.bf16.msra.mxu0 %v1272
        %1350 = vmatpush.bf16.msra.mxu0 %v1271
        %1351 = vmatpush.bf16.msra.mxu0 %v1270
        %1352 = vmatmul.bf16.gmra.mxu0 %v1060
        %v1353 = vpop.f32.mrf.mxu0
        %v1354 = vadd.f32 %v1341, %v1353
        %v1355 = vpop.f32.mrf.mxu0
        %1356 = vdwg.mxu0
        %1357 = vmatpush.bf16.msra.mxu0 %v1285
        %1358 = vmatpush.bf16.msra.mxu0 %v1284
        %1359 = vmatpush.bf16.msra.mxu0 %v1283
        %1360 = vmatpush.bf16.msra.mxu0 %v1282
        %1361 = vmatpush.bf16.msra.mxu0 %v1281
        %1362 = vmatpush.bf16.msra.mxu0 %v1280
        %1363 = vmatpush.bf16.msra.mxu0 %v1279
        %1364 = vmatpush.bf16.msra.mxu0 %v1278
        %1365 = vmatmul.bf16.gmra.mxu0 %v1061
        %v1366 = vpop.f32.mrf.mxu0
        %v1367 = vadd.f32 %v1354, %v1366
        %v1368 = vpop.f32.mrf.mxu0
        %1369 = vdwg.mxu0
        %v1370 = vadd.f32 %v1057, %v1367
        %vm1371 = vcmask 257024
        %1372 = vst.msk [vmem:[#allocation3] sm:$0xf] %vm1371, %v1370
        %p1373 = scmp.eq.s32.totalorder %s26, 3
        // Predicated region
        $region76: #{tpu_custom_call.1} parent=66 // pred_check
          %p1374 = pneg %p1373
        $region77: #{tpu_custom_call.1} parent=66 // pred_check_branch
          %1376 = sbr.rel (%p1374) target = $region79
        $region78: #{tpu_custom_call.1} parent=66 // pred_region
          %v1377 = vld [vmem:[%s3 + $0x8] sm:$0xff]
          %v1378 = vld [vmem:[#allocation2] sm:$0xf]
          %v1379 = vld [vmem:[#allocation3] sm:$0xf]
          %v1380 = vadd.f32 %v1378, %v1379
          %v1381 = vperm.slane %v1377, 0
          %v1382 = vadd.f32 %v1380, %v1381
          %v1383 = vpack.c.bf16 %v1382, %v1382
          %vm1384 = vcmask 254976
          %1385 = vst.msk [vmem:[%s376] sm:$0x3] %vm1384, %v1383
        $region79: #{tpu_custom_call.1} parent=66 // pred_fallthru
          _
        %s1386 = sand.u32 %s213, 1
        %s1387 = scalar_lea.sflag [#allocation6], %s1386
        %s1388 = sand.u32 %s213, 1
        %s1389 = smul.addr %s1388, 2
        %s1390 = scalar_lea.vmem [#allocation5], %s1389
        // Predicated region
        $region80: #{tpu_custom_call.1} parent=66 // pred_check
          %p1391 = pneg %p223
        $region81: #{tpu_custom_call.1} parent=66 // pred_check_branch
          %1393 = sbr.rel (%p1391) target = $region83
        $region82: #{tpu_custom_call.1} parent=66 // pred_region
          %1395 = vsyncadd %s1387, 0
          %s1396 = smul.addr %s25, 2
          %s1397 = scalar_lea.hbm %s7, %s1396
          %s1399 = sshll.u32 %s1390, 4
          %s1400 = int_to_ptr.vmem [resolvable:$true] %s1399
          %s1401 = sshll.u32 %s1397, 4
          %s1402 = int_to_ptr.hbm [resolvable:$true] %s1401
          %1404 = dma.vmem_to_hbm [thread:$0]  %s1400, 32, %s1402, %s1387
        $region83: #{tpu_custom_call.1} parent=66 // pred_fallthru
          _
      $region67: #{tpu_custom_call.1} parent=5 // pred_fallthru
        _
      %p1405 = scmp.le.s32.totalorder 2, %s16
      // Predicated region
      $region84: #{tpu_custom_call.1} parent=5 // pred_check
        %p1406 = pneg %p1405
      $region85: #{tpu_custom_call.1} parent=5 // pred_check_branch
        %1408 = sbr.rel (%p1406) target = $region87
      $region86: #{tpu_custom_call.1} parent=5 // pred_region
        %s1409 = ssub.s32 %s16, 2
        // Predicated region
        $region88: #{tpu_custom_call.1} parent=86 // pred_check
          %p1410 = pneg %p229
        $region89: #{tpu_custom_call.1} parent=86 // pred_check_branch
          %1412 = sbr.rel (%p1410) target = $region91
        $region90: #{tpu_custom_call.1} parent=86 // pred_region
          %s1413 = sand.u32 %s214, 1
          %s1414 = scalar_lea.sflag [#allocation6], %s1413
          %s1415 = sand.u32 %s214, 1
          %s1416 = smul.addr %s1415, 2
          %s1417 = scalar_lea.vmem [#allocation5], %s1416
          %1419 = dma.done %s1414, 32
        $region91: #{tpu_custom_call.1} parent=86 // pred_fallthru
          _
      $region87: #{tpu_custom_call.1} parent=5 // pred_fallthru
        _
    $region6: #{tpu_custom_call.1} parent=1 // loop_footer
      %s20 = sadd.s32 1, %s16
    $region7: #{tpu_custom_call.1} parent=1 // loop_footer_branch
      %15 = sbr.rel target = $region3
    $region8: #{tpu_custom_call.1} parent=1 // loop_exit
      _
    %1420 = vsyncpa [#allocation6], 1
    %s1421 = scalar_lea.sflag [#allocation6], 1
    %1422 = vsyncpa %s1421, 1

</llo_original>
